<compile_context>
chip_gen: v6e
topology: v6e:2x2x1
jax: 0.10.0
libtpu: 0.0.40
codegen_flags: <defaults>
</compile_context>

<pallas_src>
import numpy as np

import jax
import jax.numpy as jnp
from jax import lax
from jax.experimental import pallas as pl
from jax.experimental.pallas import tpu as pltpu


def _block1_kernel(x_ref,
                   w1_ref, b1_ref,
                   w2_ref, b2_ref,
                   w3_ref, b3_ref,
                   out_ref,
                   xpad_ref, tpad_ref):
    """One block of `n_block` images.

    x_ref    : (Nb, H, W*Cin)        input, width*channels flattened on lanes
    wK_ref   : (3, W*CinK, W*Cout)   banded conv weights (BN scale folded in),
                                     one band matrix per kernel row kh
    bK_ref   : (1, W*Cout)           folded bias, tiled across width
    out_ref  : (Nb, H, W*Cout)       lane-dense output block
    xpad_ref : (Nb, H+2, W*Cin)      height-padded input scratch
    tpad_ref : (Nb, H+2, W*Cout)     height-padded intermediate scratch
    """
    Nb, H, _ = x_ref.shape
    WCout = out_ref.shape[-1]

    def zero_border_rows(ref):
        # Only the 2 height-pad rows need zeroing; the interior is fully
        # overwritten every step.  Done every step (scratch starts
        # uninitialized and 'parallel' steps may be split across cores).
        z = jnp.zeros((ref.shape[0], 1, ref.shape[2]), jnp.float32)
        ref[:, 0:1, :] = z
        ref[:, H + 1:H + 2, :] = z

    zero_border_rows(xpad_ref)
    zero_border_rows(tpad_ref)

    def conv_bias_relu6(pad_ref, w_ref, b_ref):
        # 3 dots (one per kernel row); width taps + width zero-pad are encoded
        # in the banded weight, so no per-tap slicing is needed.
        k = pad_ref.shape[-1]
        acc = jnp.zeros((Nb * H, WCout), jnp.float32)
        for kh in range(3):
            xs = pad_ref[:, kh:kh + H, :].reshape(Nb * H, k)
            acc = acc + jnp.dot(xs, w_ref[kh],
                                preferred_element_type=jnp.float32)
        y = acc + b_ref[...]                   # (Nb*H, W*Cout) + (1, W*Cout)
        return jnp.clip(y, 0.0, 6.0)           # ReLU6

    # ---- block 1 ----
    xpad_ref[:, 1:1 + H, :] = x_ref[...]
    t1 = conv_bias_relu6(xpad_ref, w1_ref, b1_ref)     # (Nb*H, W*Cout)

    # ---- block 2 ----
    tpad_ref[:, 1:1 + H, :] = t1.reshape(Nb, H, WCout)
    t2 = conv_bias_relu6(tpad_ref, w2_ref, b2_ref)

    # ---- block 3 ----
    tpad_ref[:, 1:1 + H, :] = t2.reshape(Nb, H, WCout)
    t3 = conv_bias_relu6(tpad_ref, w3_ref, b3_ref)

    # ---- residual add + lane-dense store ----
    out_ref[...] = (t3 + t1).reshape(Nb, H, WCout).astype(out_ref.dtype)


def make_block_params(key, cin, cout, eps=1e-5):
    """Deterministic params for one Block (Conv2d + BatchNorm2d), PyTorch layout."""
    kw_, kb, kg, kbeta, km, kv = jax.random.split(key, 6)
    w_pt = 0.1 * jax.random.normal(kw_, (cout, cin, 3, 3), jnp.float32)
    conv_b = 0.1 * jax.random.normal(kb, (cout,), jnp.float32)
    gamma = 1.0 + 0.1 * jax.random.normal(kg, (cout,), jnp.float32)
    beta = 0.1 * jax.random.normal(kbeta, (cout,), jnp.float32)
    run_mean = 0.1 * jax.random.normal(km, (cout,), jnp.float32)
    run_var = 1.0 + 0.5 * jax.random.uniform(kv, (cout,), jnp.float32)
    return dict(w=w_pt, b=conv_b, gamma=gamma, beta=beta,
                mean=run_mean, var=run_var, eps=eps)


def _fold_and_band(block, W):
    """Fold BN into the conv weights and build banded (W*Cin, W*Cout) matrices.

    B[kh][p*Cin+ci, w*Cout+co] = w_eff[kh, p-w+1, ci, co]  for 0 <= p-w+1 <= 2,
    so the width taps and the width zero-padding are handled by the matmul.
    Host-side precompute (done once per parameter set).
    """
    w_pt = np.asarray(block["w"], np.float32)            # (Cout, Cin, 3, 3)
    cout, cin = w_pt.shape[0], w_pt.shape[1]
    scale = np.asarray(block["gamma"]) / np.sqrt(np.asarray(block["var"])
                                                 + block["eps"])
    bias = (np.asarray(block["beta"])
            + (np.asarray(block["b"]) - np.asarray(block["mean"])) * scale)
    # (kh, kw, Cin, Cout) with BN scale folded into the weights
    w_eff = np.transpose(w_pt, (2, 3, 1, 0)) * scale[None, None, None, :]

    B = np.zeros((3, W * cin, W * cout), np.float32)
    for kh in range(3):
        for w in range(W):
            for kw in range(3):
                p = w + kw - 1
                if 0 <= p < W:
                    B[kh, p * cin:(p + 1) * cin,
                          w * cout:(w + 1) * cout] = w_eff[kh, kw]
    b_wide = np.tile(bias.astype(np.float32), W).reshape(1, W * cout)
    return jnp.asarray(B), jnp.asarray(b_wide)


def prepare_kernel_params(blocks, W):
    """blocks: [block1, block2, block3] dicts from make_block_params."""
    return [_fold_and_band(b, W) for b in blocks]


def block1_forward(x_nchw, kparams, n_block=None):
    """x_nchw: (N, Cin, H, W) float32.  kparams: output of prepare_kernel_params."""
    N, Cin, H, W = x_nchw.shape
    (w1, b1), (w2, b2), (w3, b3) = kparams
    Cout = w1.shape[-1] // W

    if n_block is None:
        # Keep >= 2 parallel grid steps (v7x: 2 TensorCores) while folding as
        # many images as possible into the matmul M dimension per step.
        n_block = N // 2 if (N >= 2 and N % 2 == 0) else 1
    assert N % n_block == 0
    grid = (N // n_block,)

    # NCHW -> (N, H, W*Cin): channels fast along the lane axis, no host pad.
    x = jnp.transpose(x_nchw, (0, 2, 3, 1)).reshape(N, H, W * Cin)

    def full_spec(a):
        return pl.BlockSpec(a.shape, lambda n, nd=a.ndim: (0,) * nd)

    out = pl.pallas_call(
        _block1_kernel,
        out_shape=jax.ShapeDtypeStruct((N, H, W * Cout), jnp.float32),
        grid_spec=pltpu.PrefetchScalarGridSpec(
            num_scalar_prefetch=0,
            grid=grid,
            in_specs=[
                pl.BlockSpec((n_block, H, W * Cin), lambda n: (n, 0, 0)),
                full_spec(w1), full_spec(b1),
                full_spec(w2), full_spec(b2),
                full_spec(w3), full_spec(b3),
            ],
            out_specs=pl.BlockSpec((n_block, H, W * Cout), lambda n: (n, 0, 0)),
            scratch_shapes=[
                pltpu.VMEM((n_block, H + 2, W * Cin), jnp.float32),
                pltpu.VMEM((n_block, H + 2, W * Cout), jnp.float32),
            ],
        ),
        compiler_params=pltpu.CompilerParams(
            dimension_semantics=("parallel",)),
    )(x, w1, b1, w2, b2, w3, b3)

    # (N, H, W*Cout) -> NCHW
    return jnp.transpose(out.reshape(N, H, W, Cout), (0, 3, 1, 2))


def block1_reference(x_nchw, blocks):
    """Pure-JAX reference using unfolded conv + BN (independent of the fold)."""
    x = jnp.transpose(x_nchw, (0, 2, 3, 1))   # NHWC

    def blk(x, p):
        w_hwio = jnp.transpose(p["w"], (2, 3, 1, 0))   # (3,3,Cin,Cout)
        y = lax.conv_general_dilated(
            x, w_hwio, window_strides=(1, 1), padding="SAME",
            dimension_numbers=("NHWC", "HWIO", "NHWC"))
        y = y + p["b"]
        y = (y - p["mean"]) / jnp.sqrt(p["var"] + p["eps"]) * p["gamma"] + p["beta"]
        return jnp.clip(y, 0.0, 6.0)

    t1 = blk(x, blocks[0])
    t2 = blk(t1, blocks[1])
    t3 = blk(t2, blocks[2])
    return jnp.transpose(t3 + t1, (0, 3, 1, 2))


if __name__ == "__main__":
    N, Cin, Cout, H, W = 2, 4, 8, 16, 16

    key = jax.random.PRNGKey(0)
    kx, k1, k2, k3 = jax.random.split(key, 4)
    x = jax.random.normal(kx, (N, Cin, H, W), jnp.float32)

    blocks = [make_block_params(k1, Cin, Cout),
              make_block_params(k2, Cout, Cout),
              make_block_params(k3, Cout, Cout)]
    kparams = prepare_kernel_params(blocks, W)

    out = jax.block_until_ready(block1_forward(x, kparams))
    ref = jax.block_until_ready(block1_reference(x, blocks))

    assert out.shape == (N, Cout, H, W), out.shape
    max_err = float(jnp.max(jnp.abs(out - ref)))
    assert jnp.allclose(out, ref, atol=1e-4, rtol=1e-4), max_err
    print("KERNEL_OK")
</pallas_src>

<mosaic_0001>
module attributes {stable_mosaic.version = 11 : i64} {
  func.func @_block1_kernel(%arg0: i32, %arg1: memref<1x16x64xf32, #tpu.memory_space<vmem>>, %arg2: memref<3x64x128xf32, #tpu.memory_space<vmem>>, %arg3: memref<1x128xf32, #tpu.memory_space<vmem>>, %arg4: memref<3x128x128xf32, #tpu.memory_space<vmem>>, %arg5: memref<1x128xf32, #tpu.memory_space<vmem>>, %arg6: memref<3x128x128xf32, #tpu.memory_space<vmem>>, %arg7: memref<1x128xf32, #tpu.memory_space<vmem>>, %arg8: memref<1x16x128xf32, #tpu.memory_space<vmem>>, %arg9: memref<1x18x64xf32, #tpu.memory_space<vmem>>, %arg10: memref<1x18x128xf32, #tpu.memory_space<vmem>>) attributes {dimension_semantics = [#tpu.dimension_semantics<parallel>], iteration_bounds = array<i64: 2>, scalar_prefetch = 0 : i64, scratch_operands = 2 : i64, tpu.core_type = #tpu.core_type<tc>, window_params = [{transform_indices = @transform_0, window_bounds = array<i64: 1, 16, 64>}, {pipeline_mode = #tpu.pipeline_mode<synchronous>, transform_indices = @transform_1, window_bounds = array<i64: 3, 64, 128>}, {pipeline_mode = #tpu.pipeline_mode<synchronous>, transform_indices = @transform_2, window_bounds = array<i64: 1, 128>}, {pipeline_mode = #tpu.pipeline_mode<synchronous>, transform_indices = @transform_3, window_bounds = array<i64: 3, 128, 128>}, {pipeline_mode = #tpu.pipeline_mode<synchronous>, transform_indices = @transform_4, window_bounds = array<i64: 1, 128>}, {pipeline_mode = #tpu.pipeline_mode<synchronous>, transform_indices = @transform_5, window_bounds = array<i64: 3, 128, 128>}, {pipeline_mode = #tpu.pipeline_mode<synchronous>, transform_indices = @transform_6, window_bounds = array<i64: 1, 128>}, {transform_indices = @transform_7, window_bounds = array<i64: 1, 16, 128>}]} {
    %cst = arith.constant 0.000000e+00 : f32
    %0 = vector.broadcast %cst : f32 to vector<1x1x64xf32>
    %c0 = arith.constant 0 : index
    %c0_0 = arith.constant 0 : index
    %c0_1 = arith.constant 0 : index
    %1 = vector.load %arg9[%c0, %c0_0, %c0_1] : memref<1x18x64xf32, #tpu.memory_space<vmem>>, vector<1x1x64xf32>
    tpu.vector_store %arg9[%c0, %c0_0, %c0_1], %0 {strides = array<i32>} : memref<1x18x64xf32, #tpu.memory_space<vmem>>, vector<1x1x64xf32>,
    %c0_2 = arith.constant 0 : index
    %c17 = arith.constant 17 : index
    %c0_3 = arith.constant 0 : index
    %2 = vector.load %arg9[%c0_2, %c17, %c0_3] : memref<1x18x64xf32, #tpu.memory_space<vmem>>, vector<1x1x64xf32>
    tpu.vector_store %arg9[%c0_2, %c17, %c0_3], %0 {strides = array<i32>} : memref<1x18x64xf32, #tpu.memory_space<vmem>>, vector<1x1x64xf32>,
    %cst_4 = arith.constant 0.000000e+00 : f32
    %3 = vector.broadcast %cst_4 : f32 to vector<1x1x128xf32>
    %c0_5 = arith.constant 0 : index
    %c0_6 = arith.constant 0 : index
    %c0_7 = arith.constant 0 : index
    %4 = vector.load %arg10[%c0_5, %c0_6, %c0_7] : memref<1x18x128xf32, #tpu.memory_space<vmem>>, vector<1x1x128xf32>
    tpu.vector_store %arg10[%c0_5, %c0_6, %c0_7], %3 {strides = array<i32>} : memref<1x18x128xf32, #tpu.memory_space<vmem>>, vector<1x1x128xf32>,
    %c0_8 = arith.constant 0 : index
    %c17_9 = arith.constant 17 : index
    %c0_10 = arith.constant 0 : index
    %5 = vector.load %arg10[%c0_8, %c17_9, %c0_10] : memref<1x18x128xf32, #tpu.memory_space<vmem>>, vector<1x1x128xf32>
    tpu.vector_store %arg10[%c0_8, %c17_9, %c0_10], %3 {strides = array<i32>} : memref<1x18x128xf32, #tpu.memory_space<vmem>>, vector<1x1x128xf32>,
    %c0_11 = arith.constant 0 : index
    %c0_12 = arith.constant 0 : index
    %c0_13 = arith.constant 0 : index
    %6 = vector.load %arg1[%c0_11, %c0_12, %c0_13] : memref<1x16x64xf32, #tpu.memory_space<vmem>>, vector<1x16x64xf32>
    %c0_14 = arith.constant 0 : index
    %c1 = arith.constant 1 : index
    %c0_15 = arith.constant 0 : index
    %7 = vector.load %arg9[%c0_14, %c1, %c0_15] : memref<1x18x64xf32, #tpu.memory_space<vmem>>, vector<1x16x64xf32>
    tpu.vector_store %arg9[%c0_14, %c1, %c0_15], %6 {strides = array<i32>} : memref<1x18x64xf32, #tpu.memory_space<vmem>>, vector<1x16x64xf32>,
    %cst_16 = arith.constant 0.000000e+00 : f32
    %8 = vector.broadcast %cst_16 : f32 to vector<16x128xf32>
    %c0_17 = arith.constant 0 : index
    %c0_18 = arith.constant 0 : index
    %c0_19 = arith.constant 0 : index
    %9 = vector.load %arg9[%c0_17, %c0_18, %c0_19] : memref<1x18x64xf32, #tpu.memory_space<vmem>>, vector<1x16x64xf32>
    %10 = vector.shape_cast %9 : vector<1x16x64xf32> to vector<16x64xf32>
    %c0_20 = arith.constant 0 : index
    %c0_21 = arith.constant 0 : index
    %c0_22 = arith.constant 0 : index
    %11 = vector.load %arg2[%c0_20, %c0_21, %c0_22] : memref<3x64x128xf32, #tpu.memory_space<vmem>>, vector<1x64x128xf32>
    %12 = vector.shape_cast %11 : vector<1x64x128xf32> to vector<64x128xf32>
    %cst_23 = arith.constant dense<0.000000e+00> : vector<16x128xf32>
    %13 = tpu.matmul %10, %12, %cst_23 {dimension_numbers = #tpu.dot_dimension_numbers<[1], [0], [0], [1], [0, 0, 1, 1], [], []>} : vector<16x64xf32>, vector<64x128xf32>, vector<16x128xf32> -> vector<16x128xf32>
    %14 = arith.addf %8, %13 : vector<16x128xf32>
    %c0_24 = arith.constant 0 : index
    %c1_25 = arith.constant 1 : index
    %c0_26 = arith.constant 0 : index
    %15 = vector.load %arg9[%c0_24, %c1_25, %c0_26] : memref<1x18x64xf32, #tpu.memory_space<vmem>>, vector<1x16x64xf32>
    %16 = vector.shape_cast %15 : vector<1x16x64xf32> to vector<16x64xf32>
    %c1_27 = arith.constant 1 : index
    %c0_28 = arith.constant 0 : index
    %c0_29 = arith.constant 0 : index
    %17 = vector.load %arg2[%c1_27, %c0_28, %c0_29] : memref<3x64x128xf32, #tpu.memory_space<vmem>>, vector<1x64x128xf32>
    %18 = vector.shape_cast %17 : vector<1x64x128xf32> to vector<64x128xf32>
    %cst_30 = arith.constant dense<0.000000e+00> : vector<16x128xf32>
    %19 = tpu.matmul %16, %18, %cst_30 {dimension_numbers = #tpu.dot_dimension_numbers<[1], [0], [0], [1], [0, 0, 1, 1], [], []>} : vector<16x64xf32>, vector<64x128xf32>, vector<16x128xf32> -> vector<16x128xf32>
    %20 = arith.addf %14, %19 : vector<16x128xf32>
    %c0_31 = arith.constant 0 : index
    %c2 = arith.constant 2 : index
    %c0_32 = arith.constant 0 : index
    %21 = vector.load %arg9[%c0_31, %c2, %c0_32] : memref<1x18x64xf32, #tpu.memory_space<vmem>>, vector<1x16x64xf32>
    %22 = vector.shape_cast %21 : vector<1x16x64xf32> to vector<16x64xf32>
    %c2_33 = arith.constant 2 : index
    %c0_34 = arith.constant 0 : index
    %c0_35 = arith.constant 0 : index
    %23 = vector.load %arg2[%c2_33, %c0_34, %c0_35] : memref<3x64x128xf32, #tpu.memory_space<vmem>>, vector<1x64x128xf32>
    %24 = vector.shape_cast %23 : vector<1x64x128xf32> to vector<64x128xf32>
    %cst_36 = arith.constant dense<0.000000e+00> : vector<16x128xf32>
    %25 = tpu.matmul %22, %24, %cst_36 {dimension_numbers = #tpu.dot_dimension_numbers<[1], [0], [0], [1], [0, 0, 1, 1], [], []>} : vector<16x64xf32>, vector<64x128xf32>, vector<16x128xf32> -> vector<16x128xf32>
    %26 = arith.addf %20, %25 : vector<16x128xf32>
    %c0_37 = arith.constant 0 : index
    %c0_38 = arith.constant 0 : index
    %27 = vector.load %arg3[%c0_37, %c0_38] : memref<1x128xf32, #tpu.memory_space<vmem>>, vector<1x128xf32>
    %28 = vector.broadcast %27 : vector<1x128xf32> to vector<16x128xf32>
    %29 = arith.addf %26, %28 : vector<16x128xf32>
    %cst_39 = arith.constant 0.000000e+00 : f32
    %cst_40 = arith.constant 6.000000e+00 : f32
    %30 = vector.broadcast %cst_39 : f32 to vector<16x128xf32>
    %31 = arith.maximumf %30, %29 : vector<16x128xf32>
    %32 = vector.broadcast %cst_40 : f32 to vector<16x128xf32>
    %33 = arith.minimumf %32, %31 : vector<16x128xf32>
    %34 = vector.shape_cast %33 : vector<16x128xf32> to vector<1x16x128xf32>
    %c0_41 = arith.constant 0 : index
    %c1_42 = arith.constant 1 : index
    %c0_43 = arith.constant 0 : index
    %35 = vector.load %arg10[%c0_41, %c1_42, %c0_43] : memref<1x18x128xf32, #tpu.memory_space<vmem>>, vector<1x16x128xf32>
    tpu.vector_store %arg10[%c0_41, %c1_42, %c0_43], %34 {strides = array<i32>} : memref<1x18x128xf32, #tpu.memory_space<vmem>>, vector<1x16x128xf32>,
    %cst_44 = arith.constant 0.000000e+00 : f32
    %36 = vector.broadcast %cst_44 : f32 to vector<16x128xf32>
    %c0_45 = arith.constant 0 : index
    %c0_46 = arith.constant 0 : index
    %c0_47 = arith.constant 0 : index
    %37 = vector.load %arg10[%c0_45, %c0_46, %c0_47] : memref<1x18x128xf32, #tpu.memory_space<vmem>>, vector<1x16x128xf32>
    %38 = vector.shape_cast %37 : vector<1x16x128xf32> to vector<16x128xf32>
    %c0_48 = arith.constant 0 : index
    %c0_49 = arith.constant 0 : index
    %c0_50 = arith.constant 0 : index
    %39 = vector.load %arg4[%c0_48, %c0_49, %c0_50] : memref<3x128x128xf32, #tpu.memory_space<vmem>>, vector<1x128x128xf32>
    %40 = vector.shape_cast %39 : vector<1x128x128xf32> to vector<128x128xf32>
    %cst_51 = arith.constant dense<0.000000e+00> : vector<16x128xf32>
    %41 = tpu.matmul %38, %40, %cst_51 {dimension_numbers = #tpu.dot_dimension_numbers<[1], [0], [0], [1], [0, 0, 1, 1], [], []>} : vector<16x128xf32>, vector<128x128xf32>, vector<16x128xf32> -> vector<16x128xf32>
    %42 = arith.addf %36, %41 : vector<16x128xf32>
    %c0_52 = arith.constant 0 : index
    %c1_53 = arith.constant 1 : index
    %c0_54 = arith.constant 0 : index
    %43 = vector.load %arg10[%c0_52, %c1_53, %c0_54] : memref<1x18x128xf32, #tpu.memory_space<vmem>>, vector<1x16x128xf32>
    %44 = vector.shape_cast %43 : vector<1x16x128xf32> to vector<16x128xf32>
    %c1_55 = arith.constant 1 : index
    %c0_56 = arith.constant 0 : index
    %c0_57 = arith.constant 0 : index
    %45 = vector.load %arg4[%c1_55, %c0_56, %c0_57] : memref<3x128x128xf32, #tpu.memory_space<vmem>>, vector<1x128x128xf32>
    %46 = vector.shape_cast %45 : vector<1x128x128xf32> to vector<128x128xf32>
    %cst_58 = arith.constant dense<0.000000e+00> : vector<16x128xf32>
    %47 = tpu.matmul %44, %46, %cst_58 {dimension_numbers = #tpu.dot_dimension_numbers<[1], [0], [0], [1], [0, 0, 1, 1], [], []>} : vector<16x128xf32>, vector<128x128xf32>, vector<16x128xf32> -> vector<16x128xf32>
    %48 = arith.addf %42, %47 : vector<16x128xf32>
    %c0_59 = arith.constant 0 : index
    %c2_60 = arith.constant 2 : index
    %c0_61 = arith.constant 0 : index
    %49 = vector.load %arg10[%c0_59, %c2_60, %c0_61] : memref<1x18x128xf32, #tpu.memory_space<vmem>>, vector<1x16x128xf32>
    %50 = vector.shape_cast %49 : vector<1x16x128xf32> to vector<16x128xf32>
    %c2_62 = arith.constant 2 : index
    %c0_63 = arith.constant 0 : index
    %c0_64 = arith.constant 0 : index
    %51 = vector.load %arg4[%c2_62, %c0_63, %c0_64] : memref<3x128x128xf32, #tpu.memory_space<vmem>>, vector<1x128x128xf32>
    %52 = vector.shape_cast %51 : vector<1x128x128xf32> to vector<128x128xf32>
    %cst_65 = arith.constant dense<0.000000e+00> : vector<16x128xf32>
    %53 = tpu.matmul %50, %52, %cst_65 {dimension_numbers = #tpu.dot_dimension_numbers<[1], [0], [0], [1], [0, 0, 1, 1], [], []>} : vector<16x128xf32>, vector<128x128xf32>, vector<16x128xf32> -> vector<16x128xf32>
    %54 = arith.addf %48, %53 : vector<16x128xf32>
    %c0_66 = arith.constant 0 : index
    %c0_67 = arith.constant 0 : index
    %55 = vector.load %arg5[%c0_66, %c0_67] : memref<1x128xf32, #tpu.memory_space<vmem>>, vector<1x128xf32>
    %56 = vector.broadcast %55 : vector<1x128xf32> to vector<16x128xf32>
    %57 = arith.addf %54, %56 : vector<16x128xf32>
    %cst_68 = arith.constant 0.000000e+00 : f32
    %cst_69 = arith.constant 6.000000e+00 : f32
    %58 = vector.broadcast %cst_68 : f32 to vector<16x128xf32>
    %59 = arith.maximumf %58, %57 : vector<16x128xf32>
    %60 = vector.broadcast %cst_69 : f32 to vector<16x128xf32>
    %61 = arith.minimumf %60, %59 : vector<16x128xf32>
    %62 = vector.shape_cast %61 : vector<16x128xf32> to vector<1x16x128xf32>
    %c0_70 = arith.constant 0 : index
    %c1_71 = arith.constant 1 : index
    %c0_72 = arith.constant 0 : index
    %63 = vector.load %arg10[%c0_70, %c1_71, %c0_72] : memref<1x18x128xf32, #tpu.memory_space<vmem>>, vector<1x16x128xf32>
    tpu.vector_store %arg10[%c0_70, %c1_71, %c0_72], %62 {strides = array<i32>} : memref<1x18x128xf32, #tpu.memory_space<vmem>>, vector<1x16x128xf32>,
    %cst_73 = arith.constant 0.000000e+00 : f32
    %64 = vector.broadcast %cst_73 : f32 to vector<16x128xf32>
    %c0_74 = arith.constant 0 : index
    %c0_75 = arith.constant 0 : index
    %c0_76 = arith.constant 0 : index
    %65 = vector.load %arg10[%c0_74, %c0_75, %c0_76] : memref<1x18x128xf32, #tpu.memory_space<vmem>>, vector<1x16x128xf32>
    %66 = vector.shape_cast %65 : vector<1x16x128xf32> to vector<16x128xf32>
    %c0_77 = arith.constant 0 : index
    %c0_78 = arith.constant 0 : index
    %c0_79 = arith.constant 0 : index
    %67 = vector.load %arg6[%c0_77, %c0_78, %c0_79] : memref<3x128x128xf32, #tpu.memory_space<vmem>>, vector<1x128x128xf32>
    %68 = vector.shape_cast %67 : vector<1x128x128xf32> to vector<128x128xf32>
    %cst_80 = arith.constant dense<0.000000e+00> : vector<16x128xf32>
    %69 = tpu.matmul %66, %68, %cst_80 {dimension_numbers = #tpu.dot_dimension_numbers<[1], [0], [0], [1], [0, 0, 1, 1], [], []>} : vector<16x128xf32>, vector<128x128xf32>, vector<16x128xf32> -> vector<16x128xf32>
    %70 = arith.addf %64, %69 : vector<16x128xf32>
    %c0_81 = arith.constant 0 : index
    %c1_82 = arith.constant 1 : index
    %c0_83 = arith.constant 0 : index
    %71 = vector.load %arg10[%c0_81, %c1_82, %c0_83] : memref<1x18x128xf32, #tpu.memory_space<vmem>>, vector<1x16x128xf32>
    %72 = vector.shape_cast %71 : vector<1x16x128xf32> to vector<16x128xf32>
    %c1_84 = arith.constant 1 : index
    %c0_85 = arith.constant 0 : index
    %c0_86 = arith.constant 0 : index
    %73 = vector.load %arg6[%c1_84, %c0_85, %c0_86] : memref<3x128x128xf32, #tpu.memory_space<vmem>>, vector<1x128x128xf32>
    %74 = vector.shape_cast %73 : vector<1x128x128xf32> to vector<128x128xf32>
    %cst_87 = arith.constant dense<0.000000e+00> : vector<16x128xf32>
    %75 = tpu.matmul %72, %74, %cst_87 {dimension_numbers = #tpu.dot_dimension_numbers<[1], [0], [0], [1], [0, 0, 1, 1], [], []>} : vector<16x128xf32>, vector<128x128xf32>, vector<16x128xf32> -> vector<16x128xf32>
    %76 = arith.addf %70, %75 : vector<16x128xf32>
    %c0_88 = arith.constant 0 : index
    %c2_89 = arith.constant 2 : index
    %c0_90 = arith.constant 0 : index
    %77 = vector.load %arg10[%c0_88, %c2_89, %c0_90] : memref<1x18x128xf32, #tpu.memory_space<vmem>>, vector<1x16x128xf32>
    %78 = vector.shape_cast %77 : vector<1x16x128xf32> to vector<16x128xf32>
    %c2_91 = arith.constant 2 : index
    %c0_92 = arith.constant 0 : index
    %c0_93 = arith.constant 0 : index
    %79 = vector.load %arg6[%c2_91, %c0_92, %c0_93] : memref<3x128x128xf32, #tpu.memory_space<vmem>>, vector<1x128x128xf32>
    %80 = vector.shape_cast %79 : vector<1x128x128xf32> to vector<128x128xf32>
    %cst_94 = arith.constant dense<0.000000e+00> : vector<16x128xf32>
    %81 = tpu.matmul %78, %80, %cst_94 {dimension_numbers = #tpu.dot_dimension_numbers<[1], [0], [0], [1], [0, 0, 1, 1], [], []>} : vector<16x128xf32>, vector<128x128xf32>, vector<16x128xf32> -> vector<16x128xf32>
    %82 = arith.addf %76, %81 : vector<16x128xf32>
    %c0_95 = arith.constant 0 : index
    %c0_96 = arith.constant 0 : index
    %83 = vector.load %arg7[%c0_95, %c0_96] : memref<1x128xf32, #tpu.memory_space<vmem>>, vector<1x128xf32>
    %84 = vector.broadcast %83 : vector<1x128xf32> to vector<16x128xf32>
    %85 = arith.addf %82, %84 : vector<16x128xf32>
    %cst_97 = arith.constant 0.000000e+00 : f32
    %cst_98 = arith.constant 6.000000e+00 : f32
    %86 = vector.broadcast %cst_97 : f32 to vector<16x128xf32>
    %87 = arith.maximumf %86, %85 : vector<16x128xf32>
    %88 = vector.broadcast %cst_98 : f32 to vector<16x128xf32>
    %89 = arith.minimumf %88, %87 : vector<16x128xf32>
    %90 = arith.addf %89, %33 : vector<16x128xf32>
    %91 = vector.shape_cast %90 : vector<16x128xf32> to vector<1x16x128xf32>
    %c0_99 = arith.constant 0 : index
    %c0_100 = arith.constant 0 : index
    %c0_101 = arith.constant 0 : index
    %92 = vector.load %arg8[%c0_99, %c0_100, %c0_101] : memref<1x16x128xf32, #tpu.memory_space<vmem>>, vector<1x16x128xf32>
    tpu.vector_store %arg8[%c0_99, %c0_100, %c0_101], %91 {strides = array<i32>} : memref<1x16x128xf32, #tpu.memory_space<vmem>>, vector<1x16x128xf32>,
    return
  }
  func.func @transform_0(%arg0: i32) -> (i32, i32, i32) {
    %c0_i32 = arith.constant 0 : i32
    %c0_i32_0 = arith.constant 0 : i32
    %c0_i32_1 = arith.constant 0 : i32
    return %arg0, %c0_i32, %c0_i32_0 : i32, i32, i32
  }
  func.func @transform_1(%arg0: i32) -> (i32, i32, i32) {
    %c0_i32 = arith.constant 0 : i32
    %c0_i32_0 = arith.constant 0 : i32
    %c0_i32_1 = arith.constant 0 : i32
    %c0_i32_2 = arith.constant 0 : i32
    return %c0_i32, %c0_i32_0, %c0_i32_1 : i32, i32, i32
  }
  func.func @transform_2(%arg0: i32) -> (i32, i32) {
    %c0_i32 = arith.constant 0 : i32
    %c0_i32_0 = arith.constant 0 : i32
    %c0_i32_1 = arith.constant 0 : i32
    return %c0_i32, %c0_i32_0 : i32, i32
  }
  func.func @transform_3(%arg0: i32) -> (i32, i32, i32) {
    %c0_i32 = arith.constant 0 : i32
    %c0_i32_0 = arith.constant 0 : i32
    %c0_i32_1 = arith.constant 0 : i32
    %c0_i32_2 = arith.constant 0 : i32
    return %c0_i32, %c0_i32_0, %c0_i32_1 : i32, i32, i32
  }
  func.func @transform_4(%arg0: i32) -> (i32, i32) {
    %c0_i32 = arith.constant 0 : i32
    %c0_i32_0 = arith.constant 0 : i32
    %c0_i32_1 = arith.constant 0 : i32
    return %c0_i32, %c0_i32_0 : i32, i32
  }
  func.func @transform_5(%arg0: i32) -> (i32, i32, i32) {
    %c0_i32 = arith.constant 0 : i32
    %c0_i32_0 = arith.constant 0 : i32
    %c0_i32_1 = arith.constant 0 : i32
    %c0_i32_2 = arith.constant 0 : i32
    return %c0_i32, %c0_i32_0, %c0_i32_1 : i32, i32, i32
  }
  func.func @transform_6(%arg0: i32) -> (i32, i32) {
    %c0_i32 = arith.constant 0 : i32
    %c0_i32_0 = arith.constant 0 : i32
    %c0_i32_1 = arith.constant 0 : i32
    return %c0_i32, %c0_i32_0 : i32, i32
  }
  func.func @transform_7(%arg0: i32) -> (i32, i32, i32) {
    %c0_i32 = arith.constant 0 : i32
    %c0_i32_0 = arith.constant 0 : i32
    %c0_i32_1 = arith.constant 0 : i32
    return %arg0, %c0_i32, %c0_i32_0 : i32, i32, i32
  }
}

</mosaic_0001>

<llo_original>
// kernel: tpu_custom_call.1
$region0: #{tpu_custom_call.1}
  #allocation0 [shape = 'u32[]', space=smem, size = 0x4, offset = 0x4, fixed_abs, tag = 'smem constant byte address 0x4 - core index']
  #allocation1 [shape = 'u32[144,128]{1,0:T(1,128)}', space=vmem, size = 0x12000, scoped, tag = 'internal scratch']
  #allocation2 [shape = 'f32[1,18,64]{2,1,0:T(8,128)}', space=vmem, size = 0x3000, scoped, tag = 'scratch operand']
  #allocation3 [shape = 'f32[1,18,128]{2,1,0:T(8,128)}', space=vmem, size = 0x3000, scoped, tag = 'scratch operand']
  %s0 = inlined_call_operand.hbm [shape: f32[2,16,64], index: 0, kind: input, shape index: {}]
  %s1 = inlined_call_operand.hbm [shape: f32[3,64,128], index: 1, kind: input, shape index: {}]
  %s2 = inlined_call_operand.vmem [shape: f32[1,128], index: 2, kind: input, shape index: {}]
  %s3 = inlined_call_operand.hbm [shape: f32[3,128,128], index: 3, kind: input, shape index: {}]
  %s4 = inlined_call_operand.vmem [shape: f32[1,128], index: 4, kind: input, shape index: {}]
  %s5 = inlined_call_operand.hbm [shape: f32[3,128,128], index: 5, kind: input, shape index: {}]
  %s6 = inlined_call_operand.vmem [shape: f32[1,128], index: 6, kind: input, shape index: {}]
  %s7 = inlined_call_operand.hbm [shape: f32[2,16,128], index: 7, kind: output, shape index: {}]
  %s8 = sld [smem:[#allocation0]]
  $region77: #{tpu_custom_call.1} parent=0
    _
  %s10 = ssub.s32 1, %s8
  %s11 = scalar_select 0, %s10, %s8
  $region1: #{tpu_custom_call.1} parent=0
    #allocation4 [shape = 'u8[16384]{0}', space=vmem, size = 0x4000, scoped, tag = 'input window, operand 0']
    #allocation5 [shape = 's32[2]{0}', space=sflag, size = 0x8, scoped, tag = 'scoped memory for tpu_custom_call.1']
    #allocation6 [shape = 's32[2]{0}', space=sflag, size = 0x8, scoped, tag = 'scoped memory for tpu_custom_call.1']
    #allocation7 [shape = 'u8[98304]{0}', space=vmem, size = 0x18000, scoped, tag = 'input window, operand 1, single buffered']
    #allocation8 [shape = 's32[1]{0}', space=sflag, size = 0x4, scoped, tag = 'scoped memory for tpu_custom_call.1']
    #allocation9 [shape = 'u8[196608]{0}', space=vmem, size = 0x30000, scoped, tag = 'input window, operand 3, single buffered']
    #allocation10 [shape = 'u8[196608]{0}', space=vmem, size = 0x30000, scoped, tag = 'input window, operand 5, single buffered']
    #allocation11 [shape = 's32[1]{0}', space=sflag, size = 0x4, scoped, tag = 'scoped memory for tpu_custom_call.1']
    #allocation12 [shape = 'u8[16384]{0}', space=vmem, size = 0x4000, scoped, tag = 'output window, operand 0']
    %12 = vsyncpa [#allocation5], 0
    %s13 = scalar_lea.sflag [#allocation5], 1
    %14 = vsyncpa %s13, 0
    %15 = vsyncpa [#allocation8], 0
    %16 = vsyncpa [#allocation11], 0
    %17 = vsyncpa [#allocation6], 0
    %s18 = scalar_lea.sflag [#allocation6], 1
    %19 = vsyncpa %s18, 0
    loop: start=0, step=1, limit=4
    $region2: #{tpu_custom_call.1} parent=1 // loop_pre_header
      _
    $region3: #{tpu_custom_call.1} parent=1 // loop_header
      %s21 = sphi 0, %s25
      %p22 = scmp.ge.s32.totalorder %s21, 4
      %s31 = sphi 0, %s33
      %s34 = sphi 0, %s31
      %s35 = sphi 0, %s34
      %s51 = sphi 0, %s35
      %s55 = sphi 0, %s55
      %s57 = sphi 0, %s55
      %s58 = sphi 0, %s57
      %s72 = sphi 0, %s58
      %s76 = sphi 0, %s76
      %s78 = sphi 0, %s76
      %s79 = sphi 0, %s78
      %s93 = sphi 0, %s79
      %s97 = sphi 0, %s97
      %s99 = sphi 0, %s97
      %s100 = sphi 0, %s99
      %s114 = sphi 0, %s100
      %s118 = sphi 0, %s118
      %s120 = sphi 0, %s118
      %s121 = sphi 0, %s120
      %s135 = sphi 0, %s121
      %s139 = sphi 0, %s139
      %s141 = sphi 0, %s139
      %s142 = sphi 0, %s141
      %s156 = sphi 0, %s142
      %s160 = sphi 0, %s160
      %s162 = sphi 0, %s160
      %s163 = sphi 0, %s162
      %s177 = sphi 0, %s163
      %s183 = sphi 0, %s185
      %s186 = sphi 0, %s183
      %s187 = sphi 0, %s186
      %s203 = sphi 0, %s187
    $region4: #{tpu_custom_call.1} parent=1 // loop_header_branch
      %24 = sbr.rel (%p22) target = $region8
    $region5: #{tpu_custom_call.1} parent=1 // loop_body
      %s26 = ssub.s32 %s21, 1
      %s27 = ssub.s32 %s21, 2
      %s28 = sadd.s32 %s21, 1
      %s29 = ssub.s32 %s21, %s28
      %p30 = scmp.eq.s32.totalorder %s29, 0
      %s32 = sadd.s32 %s31, 1
      %s33 = scalar_select %p30, %s31, %s32
      %p36 = pneg %p30
      %p37 = scmp.eq.s32.totalorder %s21, 1
      %p38 = por %p36, %p37
      %p39 = scmp.ne.s32.totalorder %s31, %s34
      %p40 = scmp.eq.s32.totalorder %s21, 0
      %p41 = por %p39, %p40
      %p42 = scmp.ne.s32.totalorder %s31, %s34
      %p43 = scmp.eq.s32.totalorder %s26, 1
      %p44 = por %p42, %p43
      %p45 = scmp.ne.s32.totalorder %s34, %s35
      %p46 = scmp.eq.s32.totalorder %s26, 0
      %p47 = por %p45, %p46
      %p48 = scmp.ne.s32.totalorder %s34, %s35
      %p49 = scmp.eq.s32.totalorder %s27, 1
      %p50 = por %p48, %p49
      %p52 = scmp.ne.s32.totalorder %s35, %s51
      %p53 = scmp.eq.s32.totalorder %s27, 0
      %p54 = por %p52, %p53
      %s56 = sadd.s32 %s55, 1
      %p59 = scmp.eq.s32.totalorder %s21, 1
      %p60 = scmp.ne.s32.totalorder %s55, %s57
      %p61 = scmp.eq.s32.totalorder %s21, 0
      %p62 = por %p60, %p61
      %p63 = scmp.ne.s32.totalorder %s55, %s57
      %p64 = scmp.eq.s32.totalorder %s26, 1
      %p65 = por %p63, %p64
      %p66 = scmp.ne.s32.totalorder %s57, %s58
      %p67 = scmp.eq.s32.totalorder %s26, 0
      %p68 = por %p66, %p67
      %p69 = scmp.ne.s32.totalorder %s57, %s58
      %p70 = scmp.eq.s32.totalorder %s27, 1
      %p71 = por %p69, %p70
      %p73 = scmp.ne.s32.totalorder %s58, %s72
      %p74 = scmp.eq.s32.totalorder %s27, 0
      %p75 = por %p73, %p74
      %s77 = sadd.s32 %s76, 1
      %p80 = scmp.eq.s32.totalorder %s21, 1
      %p81 = scmp.ne.s32.totalorder %s76, %s78
      %p82 = scmp.eq.s32.totalorder %s21, 0
      %p83 = por %p81, %p82
      %p84 = scmp.ne.s32.totalorder %s76, %s78
      %p85 = scmp.eq.s32.totalorder %s26, 1
      %p86 = por %p84, %p85
      %p87 = scmp.ne.s32.totalorder %s78, %s79
      %p88 = scmp.eq.s32.totalorder %s26, 0
      %p89 = por %p87, %p88
      %p90 = scmp.ne.s32.totalorder %s78, %s79
      %p91 = scmp.eq.s32.totalorder %s27, 1
      %p92 = por %p90, %p91
      %p94 = scmp.ne.s32.totalorder %s79, %s93
      %p95 = scmp.eq.s32.totalorder %s27, 0
      %p96 = por %p94, %p95
      %s98 = sadd.s32 %s97, 1
      %p101 = scmp.eq.s32.totalorder %s21, 1
      %p102 = scmp.ne.s32.totalorder %s97, %s99
      %p103 = scmp.eq.s32.totalorder %s21, 0
      %p104 = por %p102, %p103
      %p105 = scmp.ne.s32.totalorder %s97, %s99
      %p106 = scmp.eq.s32.totalorder %s26, 1
      %p107 = por %p105, %p106
      %p108 = scmp.ne.s32.totalorder %s99, %s100
      %p109 = scmp.eq.s32.totalorder %s26, 0
      %p110 = por %p108, %p109
      %p111 = scmp.ne.s32.totalorder %s99, %s100
      %p112 = scmp.eq.s32.totalorder %s27, 1
      %p113 = por %p111, %p112
      %p115 = scmp.ne.s32.totalorder %s100, %s114
      %p116 = scmp.eq.s32.totalorder %s27, 0
      %p117 = por %p115, %p116
      %s119 = sadd.s32 %s118, 1
      %p122 = scmp.eq.s32.totalorder %s21, 1
      %p123 = scmp.ne.s32.totalorder %s118, %s120
      %p124 = scmp.eq.s32.totalorder %s21, 0
      %p125 = por %p123, %p124
      %p126 = scmp.ne.s32.totalorder %s118, %s120
      %p127 = scmp.eq.s32.totalorder %s26, 1
      %p128 = por %p126, %p127
      %p129 = scmp.ne.s32.totalorder %s120, %s121
      %p130 = scmp.eq.s32.totalorder %s26, 0
      %p131 = por %p129, %p130
      %p132 = scmp.ne.s32.totalorder %s120, %s121
      %p133 = scmp.eq.s32.totalorder %s27, 1
      %p134 = por %p132, %p133
      %p136 = scmp.ne.s32.totalorder %s121, %s135
      %p137 = scmp.eq.s32.totalorder %s27, 0
      %p138 = por %p136, %p137
      %s140 = sadd.s32 %s139, 1
      %p143 = scmp.eq.s32.totalorder %s21, 1
      %p144 = scmp.ne.s32.totalorder %s139, %s141
      %p145 = scmp.eq.s32.totalorder %s21, 0
      %p146 = por %p144, %p145
      %p147 = scmp.ne.s32.totalorder %s139, %s141
      %p148 = scmp.eq.s32.totalorder %s26, 1
      %p149 = por %p147, %p148
      %p150 = scmp.ne.s32.totalorder %s141, %s142
      %p151 = scmp.eq.s32.totalorder %s26, 0
      %p152 = por %p150, %p151
      %p153 = scmp.ne.s32.totalorder %s141, %s142
      %p154 = scmp.eq.s32.totalorder %s27, 1
      %p155 = por %p153, %p154
      %p157 = scmp.ne.s32.totalorder %s142, %s156
      %p158 = scmp.eq.s32.totalorder %s27, 0
      %p159 = por %p157, %p158
      %s161 = sadd.s32 %s160, 1
      %p164 = scmp.eq.s32.totalorder %s21, 1
      %p165 = scmp.ne.s32.totalorder %s160, %s162
      %p166 = scmp.eq.s32.totalorder %s21, 0
      %p167 = por %p165, %p166
      %p168 = scmp.ne.s32.totalorder %s160, %s162
      %p169 = scmp.eq.s32.totalorder %s26, 1
      %p170 = por %p168, %p169
      %p171 = scmp.ne.s32.totalorder %s162, %s163
      %p172 = scmp.eq.s32.totalorder %s26, 0
      %p173 = por %p171, %p172
      %p174 = scmp.ne.s32.totalorder %s162, %s163
      %p175 = scmp.eq.s32.totalorder %s27, 1
      %p176 = por %p174, %p175
      %p178 = scmp.ne.s32.totalorder %s163, %s177
      %p179 = scmp.eq.s32.totalorder %s27, 0
      %p180 = por %p178, %p179
      %s181 = ssub.s32 %s21, %s28
      %p182 = scmp.eq.s32.totalorder %s181, 0
      %s184 = sadd.s32 %s183, 1
      %s185 = scalar_select %p182, %s183, %s184
      %p188 = pneg %p182
      %p189 = scmp.eq.s32.totalorder %s21, 1
      %p190 = por %p188, %p189
      %p191 = scmp.ne.s32.totalorder %s183, %s186
      %p192 = scmp.eq.s32.totalorder %s21, 0
      %p193 = por %p191, %p192
      %p194 = scmp.ne.s32.totalorder %s183, %s186
      %p195 = scmp.eq.s32.totalorder %s26, 1
      %p196 = por %p194, %p195
      %p197 = scmp.ne.s32.totalorder %s186, %s187
      %p198 = scmp.eq.s32.totalorder %s26, 0
      %p199 = por %p197, %p198
      %p200 = scmp.ne.s32.totalorder %s186, %s187
      %p201 = scmp.eq.s32.totalorder %s27, 1
      %p202 = por %p200, %p201
      %p204 = scmp.ne.s32.totalorder %s187, %s203
      %p205 = scmp.eq.s32.totalorder %s27, 0
      %p206 = por %p204, %p205
      %p207 = scmp.le.s32.totalorder 1, %s21
      %p208 = scmp.lt.s32.totalorder %s21, 3
      %p209 = pnand %p207, %p208
      %p210 = pneg %p209
      // Predicated region
      $region9: #{tpu_custom_call.1} parent=5 // pred_check
        _
      $region10: #{tpu_custom_call.1} parent=5 // pred_check_branch
        %212 = sbr.rel (%p209) target = $region12
      $region11: #{tpu_custom_call.1} parent=5 // pred_region
        %s213 = ssub.s32 %s21, 1
        // Predicated region
        $region13: #{tpu_custom_call.1} parent=11 // pred_check
          %p214 = pneg %p68
        $region14: #{tpu_custom_call.1} parent=11 // pred_check_branch
          %216 = sbr.rel (%p214) target = $region16
        $region15: #{tpu_custom_call.1} parent=11 // pred_region
          %s218 = ssub.s32 3072, 3072
          %219 = vsyncadd [#allocation8], %s218
          %s220 = sshll.u32 [#allocation7], 4
          %s221 = int_to_ptr.vmem [resolvable:$true] %s220
          %226 = dma.hbm_to_vmem [thread:$0]  %s1, 3072, %s221, [#allocation8], 128, 128, 8
        $region16: #{tpu_custom_call.1} parent=11 // pred_fallthru
          _
        // Predicated region
        $region17: #{tpu_custom_call.1} parent=11 // pred_check
          %p227 = pneg %p89
        $region18: #{tpu_custom_call.1} parent=11 // pred_check_branch
          %229 = sbr.rel (%p227) target = $region20
        $region19: #{tpu_custom_call.1} parent=11 // pred_region
          _
        $region20: #{tpu_custom_call.1} parent=11 // pred_fallthru
          _
        // Predicated region
        $region21: #{tpu_custom_call.1} parent=11 // pred_check
          %p230 = pneg %p110
        $region22: #{tpu_custom_call.1} parent=11 // pred_check_branch
          %232 = sbr.rel (%p230) target = $region24
        $region23: #{tpu_custom_call.1} parent=11 // pred_region
          %s234 = ssub.s32 6144, 6144
          %235 = vsyncadd [#allocation8], %s234
          %s236 = sshll.u32 [#allocation9], 4
          %s237 = int_to_ptr.vmem [resolvable:$true] %s236
          %242 = dma.hbm_to_vmem [thread:$0]  %s3, 6144, %s237, [#allocation8], 128, 128, 8
        $region24: #{tpu_custom_call.1} parent=11 // pred_fallthru
          _
        // Predicated region
        $region25: #{tpu_custom_call.1} parent=11 // pred_check
          %p243 = pneg %p131
        $region26: #{tpu_custom_call.1} parent=11 // pred_check_branch
          %245 = sbr.rel (%p243) target = $region28
        $region27: #{tpu_custom_call.1} parent=11 // pred_region
          _
        $region28: #{tpu_custom_call.1} parent=11 // pred_fallthru
          _
        // Predicated region
        $region29: #{tpu_custom_call.1} parent=11 // pred_check
          %p246 = pneg %p152
        $region30: #{tpu_custom_call.1} parent=11 // pred_check_branch
          %248 = sbr.rel (%p246) target = $region32
        $region31: #{tpu_custom_call.1} parent=11 // pred_region
          %s250 = ssub.s32 6144, 6144
          %251 = vsyncadd [#allocation11], %s250
          %s252 = sshll.u32 [#allocation10], 4
          %s253 = int_to_ptr.vmem [resolvable:$true] %s252
          %258 = dma.hbm_to_vmem [thread:$0]  %s5, 6144, %s253, [#allocation11], 128, 128, 8
        $region32: #{tpu_custom_call.1} parent=11 // pred_fallthru
          _
        // Predicated region
        $region33: #{tpu_custom_call.1} parent=11 // pred_check
          %p259 = pneg %p173
        $region34: #{tpu_custom_call.1} parent=11 // pred_check_branch
          %261 = sbr.rel (%p259) target = $region36
        $region35: #{tpu_custom_call.1} parent=11 // pred_region
          _
        $region36: #{tpu_custom_call.1} parent=11 // pred_fallthru
          _
      $region12: #{tpu_custom_call.1} parent=5 // pred_fallthru
        _
      %p262 = scmp.lt.s32.totalorder %s21, 2
      // Predicated region
      $region37: #{tpu_custom_call.1} parent=5 // pred_check
        %p263 = pneg %p262
      $region38: #{tpu_custom_call.1} parent=5 // pred_check_branch
        %265 = sbr.rel (%p263) target = $region40
      $region39: #{tpu_custom_call.1} parent=5 // pred_region
        // Predicated region
        $region41: #{tpu_custom_call.1} parent=39 // pred_check
          %p266 = pneg %p41
        $region42: #{tpu_custom_call.1} parent=39 // pred_check_branch
          %268 = sbr.rel (%p266) target = $region44
        $region43: #{tpu_custom_call.1} parent=39 // pred_region
          %s269 = sand.u32 %s31, 1
          %s270 = scalar_lea.sflag [#allocation5], %s269
          %s271 = sand.u32 %s31, 1
          %s272 = smul.addr %s271, 16
          %s273 = scalar_lea.vmem [#allocation4], %s272
          %s275 = ssub.s32 256, 256
          %276 = vsyncadd %s270, %s275
          %s277 = smul.addr %s21, 2
          %s278 = smul.addr %s277, 128
          %s279 = scalar_lea.hbm %s0, %s278
          %s280 = sshll.u32 %s273, 4
          %s281 = int_to_ptr.vmem [resolvable:$true] %s280
          %286 = dma.hbm_to_vmem [thread:$0]  %s279, 256, %s281, %s270, 128, 128, 8
        $region44: #{tpu_custom_call.1} parent=39 // pred_fallthru
          _
      $region40: #{tpu_custom_call.1} parent=5 // pred_fallthru
        _
      %p287 = scmp.le.s32.totalorder 1, %s21
      %p288 = scmp.lt.s32.totalorder %s21, 3
      %p289 = pnand %p287, %p288
      %p290 = pneg %p289
      // Predicated region
      $region45: #{tpu_custom_call.1} parent=5 // pred_check
        _
      $region46: #{tpu_custom_call.1} parent=5 // pred_check_branch
        %292 = sbr.rel (%p289) target = $region48
      $region47: #{tpu_custom_call.1} parent=5 // pred_region
        %s293 = ssub.s32 %s21, 1
        %s294 = sand.u32 %s34, 1
        %s295 = scalar_lea.sflag [#allocation5], %s294
        %s296 = sand.u32 %s34, 1
        %s297 = smul.addr %s296, 16
        %s298 = scalar_lea.vmem [#allocation4], %s297
        // Predicated region
        $region49: #{tpu_custom_call.1} parent=47 // pred_check
          %p299 = pneg %p47
        $region50: #{tpu_custom_call.1} parent=47 // pred_check_branch
          %301 = sbr.rel (%p299) target = $region52
        $region51: #{tpu_custom_call.1} parent=47 // pred_region
          %302 = dma.done %s295, 256
        $region52: #{tpu_custom_call.1} parent=47 // pred_fallthru
          _
        // Predicated region
        $region53: #{tpu_custom_call.1} parent=47 // pred_check
          %p303 = pneg %p68
        $region54: #{tpu_custom_call.1} parent=47 // pred_check_branch
          %305 = sbr.rel (%p303) target = $region56
        $region55: #{tpu_custom_call.1} parent=47 // pred_region
          %306 = dma.done [#allocation8], 3072
        $region56: #{tpu_custom_call.1} parent=47 // pred_fallthru
          _
        // Predicated region
        $region57: #{tpu_custom_call.1} parent=47 // pred_check
          %p307 = pneg %p110
        $region58: #{tpu_custom_call.1} parent=47 // pred_check_branch
          %309 = sbr.rel (%p307) target = $region60
        $region59: #{tpu_custom_call.1} parent=47 // pred_region
          %310 = dma.done [#allocation8], 6144
        $region60: #{tpu_custom_call.1} parent=47 // pred_fallthru
          _
        // Predicated region
        $region61: #{tpu_custom_call.1} parent=47 // pred_check
          %p311 = pneg %p152
        $region62: #{tpu_custom_call.1} parent=47 // pred_check_branch
          %313 = sbr.rel (%p311) target = $region64
        $region63: #{tpu_custom_call.1} parent=47 // pred_region
          %314 = dma.done [#allocation11], 6144
        $region64: #{tpu_custom_call.1} parent=47 // pred_fallthru
          _
        %s315 = sand.u32 %s34, 1
        %s316 = scalar_lea.sflag [#allocation5], %s315
        %s317 = sand.u32 %s34, 1
        %s318 = smul.addr %s317, 16
        %s319 = scalar_lea.vmem [#allocation4], %s318
        %p320 = pneg %p47
        %p321 = pneg %p44
        %p322 = pneg %p68
        %p323 = pneg %p65
        %p324 = pneg %p89
        %p325 = pneg %p86
        %p326 = pneg %p110
        %p327 = pneg %p107
        %p328 = pneg %p131
        %p329 = pneg %p128
        %p330 = pneg %p152
        %p331 = pneg %p149
        %p332 = pneg %p173
        %p333 = pneg %p170
        %p334 = pneg %p199
        %p335 = pneg %p196
        %s336 = sand.u32 %s186, 1
        %s337 = scalar_lea.sflag [#allocation6], %s336
        %s338 = sand.u32 %s186, 1
        %s339 = smul.addr %s338, 16
        %s340 = scalar_lea.vmem [#allocation12], %s339
        %vm341 = vcmask 516096
        %342 = vst.msk [vmem:[#allocation2] sm:$0x1] %vm341, 0.0
        %343 = vst.msk [vmem:[#allocation2 + $0x11] sm:$0x1] %vm341, 0.0
        %344 = vst [vmem:[#allocation3] sm:$0x1] 0.0
        %345 = vst [vmem:[#allocation3 + $0x11] sm:$0x1] 0.0
        %v346 = vld [vmem:[%s298] sm:$0xff]
        %v347 = vld [vmem:[%s298 + $0x8] sm:$0xff]
        %vm348 = vcmask 523264
        %349 = vst.msk [vmem:[#allocation2 + $0x1] sm:$0xff] %vm348, %v346
        %350 = vst.msk [vmem:[#allocation2 + $0x9] sm:$0xff] %vm348, %v347
        %v351 = vld [vmem:[#allocation2] sm:$0xff]
        %v352 = vld [vmem:[#allocation2 + $0x8] sm:$0xff]
        %v353 = vld [vmem:[#allocation7] sm:$0xff]
        %v354 = vld [vmem:[#allocation7 + $0x8] sm:$0xff]
        %v355 = vld [vmem:[#allocation7 + $0x10] sm:$0xff]
        %v356 = vld [vmem:[#allocation7 + $0x18] sm:$0xff]
        %v357 = vld [vmem:[#allocation7 + $0x20] sm:$0xff]
        %v358 = vld [vmem:[#allocation7 + $0x28] sm:$0xff]
        %v359 = vld [vmem:[#allocation7 + $0x30] sm:$0xff]
        %v360 = vld [vmem:[#allocation7 + $0x38] sm:$0xff]
        %v361 = vld [vmem:[#allocation2 + $0x1] sm:$0xff]
        %v362 = vld [vmem:[#allocation2 + $0x9] sm:$0xff]
        %s363 = scalar_lea.vmem [#allocation7], 64
        %v364 = vld [vmem:[%s363] sm:$0xff]
        %v365 = vld [vmem:[%s363 + $0x8] sm:$0xff]
        %v366 = vld [vmem:[%s363 + $0x10] sm:$0xff]
        %v367 = vld [vmem:[%s363 + $0x18] sm:$0xff]
        %v368 = vld [vmem:[%s363 + $0x20] sm:$0xff]
        %v369 = vld [vmem:[%s363 + $0x28] sm:$0xff]
        %v370 = vld [vmem:[%s363 + $0x30] sm:$0xff]
        %v371 = vld [vmem:[%s363 + $0x38] sm:$0xff]
        %v373 = vsel %vm348, %v361, 0
        %v376 = vsel %vm348, %v362, 0
        %378 = vmatprep.subr.mxu0 0.0
        %379 = vmatpush1.msra.mxu0 0.0
        %380 = vmatprep.subr.mxu0 0.0
        %381 = vmatpush1.msra.mxu0 0.0
        %382 = vmatprep.subr.mxu0 0.0
        %383 = vmatpush1.msra.mxu0 0.0
        %384 = vmatprep.subr.mxu0 0.0
        %385 = vmatpush1.msra.mxu0 0.0
        %386 = vmatprep.subr.mxu0 0.0
        %387 = vmatpush1.msra.mxu0 0.0
        %388 = vmatprep.subr.mxu0 0.0
        %389 = vmatpush1.msra.mxu0 0.0
        %390 = vmatprep.subr.mxu0 0.0
        %391 = vmatpush1.msra.mxu0 0.0
        %392 = vmatprep.subr.mxu0 0.0
        %393 = vmatpush1.msra.mxu0 0.0
        %394 = vmatprep.subr.mxu0 0.0
        %395 = vmatpush1.msra.mxu0 %v371
        %396 = vmatprep.subr.mxu0 0.0
        %397 = vmatpush1.msra.mxu0 %v370
        %398 = vmatprep.subr.mxu0 0.0
        %399 = vmatpush1.msra.mxu0 %v369
        %400 = vmatprep.subr.mxu0 0.0
        %401 = vmatpush1.msra.mxu0 %v368
        %402 = vmatprep.subr.mxu0 0.0
        %403 = vmatpush1.msra.mxu0 %v367
        %404 = vmatprep.subr.mxu0 0.0
        %405 = vmatpush1.msra.mxu0 %v366
        %406 = vmatprep.subr.mxu0 0.0
        %407 = vmatpush1.msra.mxu0 %v365
        %408 = vmatprep.subr.mxu0 0.0
        %409 = vmatpush1.msra.mxu0 %v364
        %410 = vmatprep.subr.mxu0 0.0
        %411 = vmatpush2.msra.mxu0 0.0
        %412 = vmatprep.subr.mxu0 0.0
        %413 = vmatpush2.msra.mxu0 0.0
        %414 = vmatprep.subr.mxu0 0.0
        %415 = vmatpush2.msra.mxu0 0.0
        %416 = vmatprep.subr.mxu0 0.0
        %417 = vmatpush2.msra.mxu0 0.0
        %418 = vmatprep.subr.mxu0 0.0
        %419 = vmatpush2.msra.mxu0 0.0
        %420 = vmatprep.subr.mxu0 0.0
        %421 = vmatpush2.msra.mxu0 0.0
        %422 = vmatprep.subr.mxu0 0.0
        %423 = vmatpush2.msra.mxu0 0.0
        %424 = vmatprep.subr.mxu0 0.0
        %425 = vmatpush2.msra.mxu0 0.0
        %426 = vmatprep.subr.mxu0 0.0
        %427 = vmatpush2.msra.mxu0 0.0
        %428 = vmatprep.subr.mxu0 0.0
        %429 = vmatpush2.msra.mxu0 0.0
        %430 = vmatprep.subr.mxu0 0.0
        %431 = vmatpush2.msra.mxu0 0.0
        %432 = vmatprep.subr.mxu0 0.0
        %433 = vmatpush2.msra.mxu0 0.0
        %434 = vmatprep.subr.mxu0 0.0
        %435 = vmatpush2.msra.mxu0 0.0
        %436 = vmatprep.subr.mxu0 0.0
        %437 = vmatpush2.msra.mxu0 0.0
        %438 = vmatprep.subr.mxu0 0.0
        %439 = vmatpush2.msra.mxu0 0.0
        %440 = vmatprep.subr.mxu0 0.0
        %441 = vmatpush2.msra.mxu0 0.0
        %442 = vmatprep.mubr.f32.mxu0 0.0
        %443 = vmatmul.mubr.f32.gmra.mxu0 %v373
        %v444 = vpop.f32.mrf.mxu0
        %v445 = vadd.f32 0.0, %v444
        %v446 = vpop.f32.mrf.mxu0
        %447 = vmatprep.mubr.f32.mxu0 0.0
        %448 = vmatmul.mubr.f32.gmra.mxu0 %v376
        %v449 = vpop.f32.mrf.mxu0
        %v450 = vadd.f32 0.0, %v449
        %v451 = vpop.f32.mrf.mxu0
        %452 = vdwg.mxu0
        %v454 = vsel %vm348, %v351, 0
        %v457 = vsel %vm348, %v352, 0
        %459 = vmatprep.subr.mxu0 0.0
        %460 = vmatpush1.msra.mxu0 0.0
        %461 = vmatprep.subr.mxu0 0.0
        %462 = vmatpush1.msra.mxu0 0.0
        %463 = vmatprep.subr.mxu0 0.0
        %464 = vmatpush1.msra.mxu0 0.0
        %465 = vmatprep.subr.mxu0 0.0
        %466 = vmatpush1.msra.mxu0 0.0
        %467 = vmatprep.subr.mxu0 0.0
        %468 = vmatpush1.msra.mxu0 0.0
        %469 = vmatprep.subr.mxu0 0.0
        %470 = vmatpush1.msra.mxu0 0.0
        %471 = vmatprep.subr.mxu0 0.0
        %472 = vmatpush1.msra.mxu0 0.0
        %473 = vmatprep.subr.mxu0 0.0
        %474 = vmatpush1.msra.mxu0 0.0
        %475 = vmatprep.subr.mxu0 0.0
        %476 = vmatpush1.msra.mxu0 %v360
        %477 = vmatprep.subr.mxu0 0.0
        %478 = vmatpush1.msra.mxu0 %v359
        %479 = vmatprep.subr.mxu0 0.0
        %480 = vmatpush1.msra.mxu0 %v358
        %481 = vmatprep.subr.mxu0 0.0
        %482 = vmatpush1.msra.mxu0 %v357
        %483 = vmatprep.subr.mxu0 0.0
        %484 = vmatpush1.msra.mxu0 %v356
        %485 = vmatprep.subr.mxu0 0.0
        %486 = vmatpush1.msra.mxu0 %v355
        %487 = vmatprep.subr.mxu0 0.0
        %488 = vmatpush1.msra.mxu0 %v354
        %489 = vmatprep.subr.mxu0 0.0
        %490 = vmatpush1.msra.mxu0 %v353
        %491 = vmatprep.subr.mxu0 0.0
        %492 = vmatpush2.msra.mxu0 0.0
        %493 = vmatprep.subr.mxu0 0.0
        %494 = vmatpush2.msra.mxu0 0.0
        %495 = vmatprep.subr.mxu0 0.0
        %496 = vmatpush2.msra.mxu0 0.0
        %497 = vmatprep.subr.mxu0 0.0
        %498 = vmatpush2.msra.mxu0 0.0
        %499 = vmatprep.subr.mxu0 0.0
        %500 = vmatpush2.msra.mxu0 0.0
        %501 = vmatprep.subr.mxu0 0.0
        %502 = vmatpush2.msra.mxu0 0.0
        %503 = vmatprep.subr.mxu0 0.0
        %504 = vmatpush2.msra.mxu0 0.0
        %505 = vmatprep.subr.mxu0 0.0
        %506 = vmatpush2.msra.mxu0 0.0
        %507 = vmatprep.subr.mxu0 0.0
        %508 = vmatpush2.msra.mxu0 0.0
        %509 = vmatprep.subr.mxu0 0.0
        %510 = vmatpush2.msra.mxu0 0.0
        %511 = vmatprep.subr.mxu0 0.0
        %512 = vmatpush2.msra.mxu0 0.0
        %513 = vmatprep.subr.mxu0 0.0
        %514 = vmatpush2.msra.mxu0 0.0
        %515 = vmatprep.subr.mxu0 0.0
        %516 = vmatpush2.msra.mxu0 0.0
        %517 = vmatprep.subr.mxu0 0.0
        %518 = vmatpush2.msra.mxu0 0.0
        %519 = vmatprep.subr.mxu0 0.0
        %520 = vmatpush2.msra.mxu0 0.0
        %521 = vmatprep.subr.mxu0 0.0
        %522 = vmatpush2.msra.mxu0 0.0
        %523 = vmatprep.mubr.f32.mxu0 0.0
        %524 = vmatmul.mubr.f32.gmra.mxu0 %v454
        %v525 = vpop.f32.mrf.mxu0
        %v526 = vadd.f32 %v445, %v525
        %v527 = vpop.f32.mrf.mxu0
        %528 = vmatprep.mubr.f32.mxu0 0.0
        %529 = vmatmul.mubr.f32.gmra.mxu0 %v457
        %v530 = vpop.f32.mrf.mxu0
        %v531 = vadd.f32 %v450, %v530
        %v532 = vpop.f32.mrf.mxu0
        %533 = vdwg.mxu0
        %v534 = vld [vmem:[#allocation2 + $0x2] sm:$0xff]
        %v535 = vld [vmem:[#allocation2 + $0xa] sm:$0xff]
        %s536 = scalar_lea.vmem [#allocation7], 128
        %v537 = vld [vmem:[%s536] sm:$0xff]
        %v538 = vld [vmem:[%s536 + $0x8] sm:$0xff]
        %v539 = vld [vmem:[%s536 + $0x10] sm:$0xff]
        %v540 = vld [vmem:[%s536 + $0x18] sm:$0xff]
        %v541 = vld [vmem:[%s536 + $0x20] sm:$0xff]
        %v542 = vld [vmem:[%s536 + $0x28] sm:$0xff]
        %v543 = vld [vmem:[%s536 + $0x30] sm:$0xff]
        %v544 = vld [vmem:[%s536 + $0x38] sm:$0xff]
        %v546 = vsel %vm348, %v534, 0
        %v549 = vsel %vm348, %v535, 0
        %551 = vmatprep.subr.mxu0 0.0
        %552 = vmatpush1.msra.mxu0 0.0
        %553 = vmatprep.subr.mxu0 0.0
        %554 = vmatpush1.msra.mxu0 0.0
        %555 = vmatprep.subr.mxu0 0.0
        %556 = vmatpush1.msra.mxu0 0.0
        %557 = vmatprep.subr.mxu0 0.0
        %558 = vmatpush1.msra.mxu0 0.0
        %559 = vmatprep.subr.mxu0 0.0
        %560 = vmatpush1.msra.mxu0 0.0
        %561 = vmatprep.subr.mxu0 0.0
        %562 = vmatpush1.msra.mxu0 0.0
        %563 = vmatprep.subr.mxu0 0.0
        %564 = vmatpush1.msra.mxu0 0.0
        %565 = vmatprep.subr.mxu0 0.0
        %566 = vmatpush1.msra.mxu0 0.0
        %567 = vmatprep.subr.mxu0 0.0
        %568 = vmatpush1.msra.mxu0 %v544
        %569 = vmatprep.subr.mxu0 0.0
        %570 = vmatpush1.msra.mxu0 %v543
        %571 = vmatprep.subr.mxu0 0.0
        %572 = vmatpush1.msra.mxu0 %v542
        %573 = vmatprep.subr.mxu0 0.0
        %574 = vmatpush1.msra.mxu0 %v541
        %575 = vmatprep.subr.mxu0 0.0
        %576 = vmatpush1.msra.mxu0 %v540
        %577 = vmatprep.subr.mxu0 0.0
        %578 = vmatpush1.msra.mxu0 %v539
        %579 = vmatprep.subr.mxu0 0.0
        %580 = vmatpush1.msra.mxu0 %v538
        %581 = vmatprep.subr.mxu0 0.0
        %582 = vmatpush1.msra.mxu0 %v537
        %583 = vmatprep.subr.mxu0 0.0
        %584 = vmatpush2.msra.mxu0 0.0
        %585 = vmatprep.subr.mxu0 0.0
        %586 = vmatpush2.msra.mxu0 0.0
        %587 = vmatprep.subr.mxu0 0.0
        %588 = vmatpush2.msra.mxu0 0.0
        %589 = vmatprep.subr.mxu0 0.0
        %590 = vmatpush2.msra.mxu0 0.0
        %591 = vmatprep.subr.mxu0 0.0
        %592 = vmatpush2.msra.mxu0 0.0
        %593 = vmatprep.subr.mxu0 0.0
        %594 = vmatpush2.msra.mxu0 0.0
        %595 = vmatprep.subr.mxu0 0.0
        %596 = vmatpush2.msra.mxu0 0.0
        %597 = vmatprep.subr.mxu0 0.0
        %598 = vmatpush2.msra.mxu0 0.0
        %599 = vmatprep.subr.mxu0 0.0
        %600 = vmatpush2.msra.mxu0 0.0
        %601 = vmatprep.subr.mxu0 0.0
        %602 = vmatpush2.msra.mxu0 0.0
        %603 = vmatprep.subr.mxu0 0.0
        %604 = vmatpush2.msra.mxu0 0.0
        %605 = vmatprep.subr.mxu0 0.0
        %606 = vmatpush2.msra.mxu0 0.0
        %607 = vmatprep.subr.mxu0 0.0
        %608 = vmatpush2.msra.mxu0 0.0
        %609 = vmatprep.subr.mxu0 0.0
        %610 = vmatpush2.msra.mxu0 0.0
        %611 = vmatprep.subr.mxu0 0.0
        %612 = vmatpush2.msra.mxu0 0.0
        %613 = vmatprep.subr.mxu0 0.0
        %614 = vmatpush2.msra.mxu0 0.0
        %615 = vmatprep.mubr.f32.mxu0 0.0
        %616 = vmatmul.mubr.f32.gmra.mxu0 %v546
        %v617 = vpop.f32.mrf.mxu0
        %v618 = vadd.f32 0.0, %v617
        %v619 = vpop.f32.mrf.mxu0
        %620 = vmatprep.mubr.f32.mxu0 0.0
        %621 = vmatmul.mubr.f32.gmra.mxu0 %v549
        %v622 = vpop.f32.mrf.mxu0
        %v623 = vadd.f32 0.0, %v622
        %v624 = vpop.f32.mrf.mxu0
        %625 = vdwg.mxu0
        %v626 = vadd.f32 %v526, %v618
        %v627 = vadd.f32 %v531, %v623
        %v628 = vld [vmem:[%s2] sm:$0x1]
        %v630 = vlaneseq
        %v631 = vshrl.u32 %v630, 7
        %v632 = vsub.s32 0, %v631
        %v633 = vrot.slane %v628, %v632
        %v635 = vadd.f32 %v626, %v633
        %v636 = vadd.f32 %v627, %v633
        %v637 = vmax.f32 %v635, 0.0
        %v638 = vmax.f32 %v636, 0.0
        %v639 = vmin.f32 %v637, 6.0
        %v640 = vmin.f32 %v638, 6.0
        %641 = vst [vmem:[#allocation3 + $0x1] sm:$0xff] %v639
        %642 = vst [vmem:[#allocation3 + $0x9] sm:$0xff] %v640
        %v643 = vld [vmem:[#allocation3] sm:$0xff]
        %v644 = vld [vmem:[#allocation3 + $0x8] sm:$0xff]
        %v645 = vld [vmem:[#allocation9] sm:$0xff]
        %v646 = vld [vmem:[#allocation9 + $0x8] sm:$0xff]
        %v647 = vld [vmem:[#allocation9 + $0x10] sm:$0xff]
        %v648 = vld [vmem:[#allocation9 + $0x18] sm:$0xff]
        %v649 = vld [vmem:[#allocation9 + $0x20] sm:$0xff]
        %v650 = vld [vmem:[#allocation9 + $0x28] sm:$0xff]
        %v651 = vld [vmem:[#allocation9 + $0x30] sm:$0xff]
        %v652 = vld [vmem:[#allocation9 + $0x38] sm:$0xff]
        %v653 = vld [vmem:[#allocation9 + $0x40] sm:$0xff]
        %v654 = vld [vmem:[#allocation9 + $0x48] sm:$0xff]
        %v655 = vld [vmem:[#allocation9 + $0x50] sm:$0xff]
        %v656 = vld [vmem:[#allocation9 + $0x58] sm:$0xff]
        %v657 = vld [vmem:[#allocation9 + $0x60] sm:$0xff]
        %v658 = vld [vmem:[#allocation9 + $0x68] sm:$0xff]
        %v659 = vld [vmem:[#allocation9 + $0x70] sm:$0xff]
        %v660 = vld [vmem:[#allocation9 + $0x78] sm:$0xff]
        %v661 = vld [vmem:[#allocation3 + $0x1] sm:$0xff]
        %v662 = vld [vmem:[#allocation3 + $0x9] sm:$0xff]
        %s663 = scalar_lea.vmem [#allocation9], 128
        %v664 = vld [vmem:[%s663] sm:$0xff]
        %v665 = vld [vmem:[%s663 + $0x8] sm:$0xff]
        %v666 = vld [vmem:[%s663 + $0x10] sm:$0xff]
        %v667 = vld [vmem:[%s663 + $0x18] sm:$0xff]
        %v668 = vld [vmem:[%s663 + $0x20] sm:$0xff]
        %v669 = vld [vmem:[%s663 + $0x28] sm:$0xff]
        %v670 = vld [vmem:[%s663 + $0x30] sm:$0xff]
        %v671 = vld [vmem:[%s663 + $0x38] sm:$0xff]
        %v672 = vld [vmem:[%s663 + $0x40] sm:$0xff]
        %v673 = vld [vmem:[%s663 + $0x48] sm:$0xff]
        %v674 = vld [vmem:[%s663 + $0x50] sm:$0xff]
        %v675 = vld [vmem:[%s663 + $0x58] sm:$0xff]
        %v676 = vld [vmem:[%s663 + $0x60] sm:$0xff]
        %v677 = vld [vmem:[%s663 + $0x68] sm:$0xff]
        %v678 = vld [vmem:[%s663 + $0x70] sm:$0xff]
        %v679 = vld [vmem:[%s663 + $0x78] sm:$0xff]
        %680 = vmatprep.subr.mxu0 0.0
        %681 = vmatpush1.msra.mxu0 %v679
        %682 = vmatprep.subr.mxu0 0.0
        %683 = vmatpush1.msra.mxu0 %v678
        %684 = vmatprep.subr.mxu0 0.0
        %685 = vmatpush1.msra.mxu0 %v677
        %686 = vmatprep.subr.mxu0 0.0
        %687 = vmatpush1.msra.mxu0 %v676
        %688 = vmatprep.subr.mxu0 0.0
        %689 = vmatpush1.msra.mxu0 %v675
        %690 = vmatprep.subr.mxu0 0.0
        %691 = vmatpush1.msra.mxu0 %v674
        %692 = vmatprep.subr.mxu0 0.0
        %693 = vmatpush1.msra.mxu0 %v673
        %694 = vmatprep.subr.mxu0 0.0
        %695 = vmatpush1.msra.mxu0 %v672
        %696 = vmatprep.subr.mxu0 0.0
        %697 = vmatpush1.msra.mxu0 %v671
        %698 = vmatprep.subr.mxu0 0.0
        %699 = vmatpush1.msra.mxu0 %v670
        %700 = vmatprep.subr.mxu0 0.0
        %701 = vmatpush1.msra.mxu0 %v669
        %702 = vmatprep.subr.mxu0 0.0
        %703 = vmatpush1.msra.mxu0 %v668
        %704 = vmatprep.subr.mxu0 0.0
        %705 = vmatpush1.msra.mxu0 %v667
        %706 = vmatprep.subr.mxu0 0.0
        %707 = vmatpush1.msra.mxu0 %v666
        %708 = vmatprep.subr.mxu0 0.0
        %709 = vmatpush1.msra.mxu0 %v665
        %710 = vmatprep.subr.mxu0 0.0
        %711 = vmatpush1.msra.mxu0 %v664
        %712 = vmatprep.subr.mxu0 0.0
        %713 = vmatpush2.msra.mxu0 0.0
        %714 = vmatprep.subr.mxu0 0.0
        %715 = vmatpush2.msra.mxu0 0.0
        %716 = vmatprep.subr.mxu0 0.0
        %717 = vmatpush2.msra.mxu0 0.0
        %718 = vmatprep.subr.mxu0 0.0
        %719 = vmatpush2.msra.mxu0 0.0
        %720 = vmatprep.subr.mxu0 0.0
        %721 = vmatpush2.msra.mxu0 0.0
        %722 = vmatprep.subr.mxu0 0.0
        %723 = vmatpush2.msra.mxu0 0.0
        %724 = vmatprep.subr.mxu0 0.0
        %725 = vmatpush2.msra.mxu0 0.0
        %726 = vmatprep.subr.mxu0 0.0
        %727 = vmatpush2.msra.mxu0 0.0
        %728 = vmatprep.subr.mxu0 0.0
        %729 = vmatpush2.msra.mxu0 0.0
        %730 = vmatprep.subr.mxu0 0.0
        %731 = vmatpush2.msra.mxu0 0.0
        %732 = vmatprep.subr.mxu0 0.0
        %733 = vmatpush2.msra.mxu0 0.0
        %734 = vmatprep.subr.mxu0 0.0
        %735 = vmatpush2.msra.mxu0 0.0
        %736 = vmatprep.subr.mxu0 0.0
        %737 = vmatpush2.msra.mxu0 0.0
        %738 = vmatprep.subr.mxu0 0.0
        %739 = vmatpush2.msra.mxu0 0.0
        %740 = vmatprep.subr.mxu0 0.0
        %741 = vmatpush2.msra.mxu0 0.0
        %742 = vmatprep.subr.mxu0 0.0
        %743 = vmatpush2.msra.mxu0 0.0
        %744 = vmatprep.mubr.f32.mxu0 0.0
        %745 = vmatmul.mubr.f32.gmra.mxu0 %v661
        %v746 = vpop.f32.mrf.mxu0
        %v747 = vadd.f32 0.0, %v746
        %v748 = vpop.f32.mrf.mxu0
        %749 = vmatprep.mubr.f32.mxu0 0.0
        %750 = vmatmul.mubr.f32.gmra.mxu0 %v662
        %v751 = vpop.f32.mrf.mxu0
        %v752 = vadd.f32 0.0, %v751
        %v753 = vpop.f32.mrf.mxu0
        %754 = vdwg.mxu0
        %755 = vmatprep.subr.mxu0 0.0
        %756 = vmatpush1.msra.mxu0 %v660
        %757 = vmatprep.subr.mxu0 0.0
        %758 = vmatpush1.msra.mxu0 %v659
        %759 = vmatprep.subr.mxu0 0.0
        %760 = vmatpush1.msra.mxu0 %v658
        %761 = vmatprep.subr.mxu0 0.0
        %762 = vmatpush1.msra.mxu0 %v657
        %763 = vmatprep.subr.mxu0 0.0
        %764 = vmatpush1.msra.mxu0 %v656
        %765 = vmatprep.subr.mxu0 0.0
        %766 = vmatpush1.msra.mxu0 %v655
        %767 = vmatprep.subr.mxu0 0.0
        %768 = vmatpush1.msra.mxu0 %v654
        %769 = vmatprep.subr.mxu0 0.0
        %770 = vmatpush1.msra.mxu0 %v653
        %771 = vmatprep.subr.mxu0 0.0
        %772 = vmatpush1.msra.mxu0 %v652
        %773 = vmatprep.subr.mxu0 0.0
        %774 = vmatpush1.msra.mxu0 %v651
        %775 = vmatprep.subr.mxu0 0.0
        %776 = vmatpush1.msra.mxu0 %v650
        %777 = vmatprep.subr.mxu0 0.0
        %778 = vmatpush1.msra.mxu0 %v649
        %779 = vmatprep.subr.mxu0 0.0
        %780 = vmatpush1.msra.mxu0 %v648
        %781 = vmatprep.subr.mxu0 0.0
        %782 = vmatpush1.msra.mxu0 %v647
        %783 = vmatprep.subr.mxu0 0.0
        %784 = vmatpush1.msra.mxu0 %v646
        %785 = vmatprep.subr.mxu0 0.0
        %786 = vmatpush1.msra.mxu0 %v645
        %787 = vmatprep.subr.mxu0 0.0
        %788 = vmatpush2.msra.mxu0 0.0
        %789 = vmatprep.subr.mxu0 0.0
        %790 = vmatpush2.msra.mxu0 0.0
        %791 = vmatprep.subr.mxu0 0.0
        %792 = vmatpush2.msra.mxu0 0.0
        %793 = vmatprep.subr.mxu0 0.0
        %794 = vmatpush2.msra.mxu0 0.0
        %795 = vmatprep.subr.mxu0 0.0
        %796 = vmatpush2.msra.mxu0 0.0
        %797 = vmatprep.subr.mxu0 0.0
        %798 = vmatpush2.msra.mxu0 0.0
        %799 = vmatprep.subr.mxu0 0.0
        %800 = vmatpush2.msra.mxu0 0.0
        %801 = vmatprep.subr.mxu0 0.0
        %802 = vmatpush2.msra.mxu0 0.0
        %803 = vmatprep.subr.mxu0 0.0
        %804 = vmatpush2.msra.mxu0 0.0
        %805 = vmatprep.subr.mxu0 0.0
        %806 = vmatpush2.msra.mxu0 0.0
        %807 = vmatprep.subr.mxu0 0.0
        %808 = vmatpush2.msra.mxu0 0.0
        %809 = vmatprep.subr.mxu0 0.0
        %810 = vmatpush2.msra.mxu0 0.0
        %811 = vmatprep.subr.mxu0 0.0
        %812 = vmatpush2.msra.mxu0 0.0
        %813 = vmatprep.subr.mxu0 0.0
        %814 = vmatpush2.msra.mxu0 0.0
        %815 = vmatprep.subr.mxu0 0.0
        %816 = vmatpush2.msra.mxu0 0.0
        %817 = vmatprep.subr.mxu0 0.0
        %818 = vmatpush2.msra.mxu0 0.0
        %819 = vmatprep.mubr.f32.mxu0 0.0
        %820 = vmatmul.mubr.f32.gmra.mxu0 %v643
        %v821 = vpop.f32.mrf.mxu0
        %v822 = vadd.f32 %v747, %v821
        %v823 = vpop.f32.mrf.mxu0
        %824 = vmatprep.mubr.f32.mxu0 0.0
        %825 = vmatmul.mubr.f32.gmra.mxu0 %v644
        %v826 = vpop.f32.mrf.mxu0
        %v827 = vadd.f32 %v752, %v826
        %v828 = vpop.f32.mrf.mxu0
        %829 = vdwg.mxu0
        %v830 = vld [vmem:[#allocation3 + $0x2] sm:$0xff]
        %v831 = vld [vmem:[#allocation3 + $0xa] sm:$0xff]
        %s832 = scalar_lea.vmem [#allocation9], 256
        %v833 = vld [vmem:[%s832] sm:$0xff]
        %v834 = vld [vmem:[%s832 + $0x8] sm:$0xff]
        %v835 = vld [vmem:[%s832 + $0x10] sm:$0xff]
        %v836 = vld [vmem:[%s832 + $0x18] sm:$0xff]
        %v837 = vld [vmem:[%s832 + $0x20] sm:$0xff]
        %v838 = vld [vmem:[%s832 + $0x28] sm:$0xff]
        %v839 = vld [vmem:[%s832 + $0x30] sm:$0xff]
        %v840 = vld [vmem:[%s832 + $0x38] sm:$0xff]
        %v841 = vld [vmem:[%s832 + $0x40] sm:$0xff]
        %v842 = vld [vmem:[%s832 + $0x48] sm:$0xff]
        %v843 = vld [vmem:[%s832 + $0x50] sm:$0xff]
        %v844 = vld [vmem:[%s832 + $0x58] sm:$0xff]
        %v845 = vld [vmem:[%s832 + $0x60] sm:$0xff]
        %v846 = vld [vmem:[%s832 + $0x68] sm:$0xff]
        %v847 = vld [vmem:[%s832 + $0x70] sm:$0xff]
        %v848 = vld [vmem:[%s832 + $0x78] sm:$0xff]
        %849 = vmatprep.subr.mxu0 0.0
        %850 = vmatpush1.msra.mxu0 %v848
        %851 = vmatprep.subr.mxu0 0.0
        %852 = vmatpush1.msra.mxu0 %v847
        %853 = vmatprep.subr.mxu0 0.0
        %854 = vmatpush1.msra.mxu0 %v846
        %855 = vmatprep.subr.mxu0 0.0
        %856 = vmatpush1.msra.mxu0 %v845
        %857 = vmatprep.subr.mxu0 0.0
        %858 = vmatpush1.msra.mxu0 %v844
        %859 = vmatprep.subr.mxu0 0.0
        %860 = vmatpush1.msra.mxu0 %v843
        %861 = vmatprep.subr.mxu0 0.0
        %862 = vmatpush1.msra.mxu0 %v842
        %863 = vmatprep.subr.mxu0 0.0
        %864 = vmatpush1.msra.mxu0 %v841
        %865 = vmatprep.subr.mxu0 0.0
        %866 = vmatpush1.msra.mxu0 %v840
        %867 = vmatprep.subr.mxu0 0.0
        %868 = vmatpush1.msra.mxu0 %v839
        %869 = vmatprep.subr.mxu0 0.0
        %870 = vmatpush1.msra.mxu0 %v838
        %871 = vmatprep.subr.mxu0 0.0
        %872 = vmatpush1.msra.mxu0 %v837
        %873 = vmatprep.subr.mxu0 0.0
        %874 = vmatpush1.msra.mxu0 %v836
        %875 = vmatprep.subr.mxu0 0.0
        %876 = vmatpush1.msra.mxu0 %v835
        %877 = vmatprep.subr.mxu0 0.0
        %878 = vmatpush1.msra.mxu0 %v834
        %879 = vmatprep.subr.mxu0 0.0
        %880 = vmatpush1.msra.mxu0 %v833
        %881 = vmatprep.subr.mxu0 0.0
        %882 = vmatpush2.msra.mxu0 0.0
        %883 = vmatprep.subr.mxu0 0.0
        %884 = vmatpush2.msra.mxu0 0.0
        %885 = vmatprep.subr.mxu0 0.0
        %886 = vmatpush2.msra.mxu0 0.0
        %887 = vmatprep.subr.mxu0 0.0
        %888 = vmatpush2.msra.mxu0 0.0
        %889 = vmatprep.subr.mxu0 0.0
        %890 = vmatpush2.msra.mxu0 0.0
        %891 = vmatprep.subr.mxu0 0.0
        %892 = vmatpush2.msra.mxu0 0.0
        %893 = vmatprep.subr.mxu0 0.0
        %894 = vmatpush2.msra.mxu0 0.0
        %895 = vmatprep.subr.mxu0 0.0
        %896 = vmatpush2.msra.mxu0 0.0
        %897 = vmatprep.subr.mxu0 0.0
        %898 = vmatpush2.msra.mxu0 0.0
        %899 = vmatprep.subr.mxu0 0.0
        %900 = vmatpush2.msra.mxu0 0.0
        %901 = vmatprep.subr.mxu0 0.0
        %902 = vmatpush2.msra.mxu0 0.0
        %903 = vmatprep.subr.mxu0 0.0
        %904 = vmatpush2.msra.mxu0 0.0
        %905 = vmatprep.subr.mxu0 0.0
        %906 = vmatpush2.msra.mxu0 0.0
        %907 = vmatprep.subr.mxu0 0.0
        %908 = vmatpush2.msra.mxu0 0.0
        %909 = vmatprep.subr.mxu0 0.0
        %910 = vmatpush2.msra.mxu0 0.0
        %911 = vmatprep.subr.mxu0 0.0
        %912 = vmatpush2.msra.mxu0 0.0
        %913 = vmatprep.mubr.f32.mxu0 0.0
        %914 = vmatmul.mubr.f32.gmra.mxu0 %v830
        %v915 = vpop.f32.mrf.mxu0
        %v916 = vadd.f32 0.0, %v915
        %v917 = vpop.f32.mrf.mxu0
        %918 = vmatprep.mubr.f32.mxu0 0.0
        %919 = vmatmul.mubr.f32.gmra.mxu0 %v831
        %v920 = vpop.f32.mrf.mxu0
        %v921 = vadd.f32 0.0, %v920
        %v922 = vpop.f32.mrf.mxu0
        %923 = vdwg.mxu0
        %v924 = vadd.f32 %v822, %v916
        %v925 = vadd.f32 %v827, %v921
        %v926 = vld [vmem:[%s4] sm:$0x1]
        %v928 = vlaneseq
        %v929 = vshrl.u32 %v928, 7
        %v930 = vsub.s32 0, %v929
        %v931 = vrot.slane %v926, %v930
        %v933 = vadd.f32 %v924, %v931
        %v934 = vadd.f32 %v925, %v931
        %v935 = vmax.f32 %v933, 0.0
        %v936 = vmax.f32 %v934, 0.0
        %v937 = vmin.f32 %v935, 6.0
        %v938 = vmin.f32 %v936, 6.0
        %939 = vst [vmem:[#allocation3 + $0x1] sm:$0xff] %v937
        %940 = vst [vmem:[#allocation3 + $0x9] sm:$0xff] %v938
        %v941 = vld [vmem:[#allocation3] sm:$0xff]
        %v942 = vld [vmem:[#allocation3 + $0x8] sm:$0xff]
        %v943 = vld [vmem:[#allocation10] sm:$0xff]
        %v944 = vld [vmem:[#allocation10 + $0x8] sm:$0xff]
        %v945 = vld [vmem:[#allocation10 + $0x10] sm:$0xff]
        %v946 = vld [vmem:[#allocation10 + $0x18] sm:$0xff]
        %v947 = vld [vmem:[#allocation10 + $0x20] sm:$0xff]
        %v948 = vld [vmem:[#allocation10 + $0x28] sm:$0xff]
        %v949 = vld [vmem:[#allocation10 + $0x30] sm:$0xff]
        %v950 = vld [vmem:[#allocation10 + $0x38] sm:$0xff]
        %v951 = vld [vmem:[#allocation10 + $0x40] sm:$0xff]
        %v952 = vld [vmem:[#allocation10 + $0x48] sm:$0xff]
        %v953 = vld [vmem:[#allocation10 + $0x50] sm:$0xff]
        %v954 = vld [vmem:[#allocation10 + $0x58] sm:$0xff]
        %v955 = vld [vmem:[#allocation10 + $0x60] sm:$0xff]
        %v956 = vld [vmem:[#allocation10 + $0x68] sm:$0xff]
        %v957 = vld [vmem:[#allocation10 + $0x70] sm:$0xff]
        %v958 = vld [vmem:[#allocation10 + $0x78] sm:$0xff]
        %v959 = vld [vmem:[#allocation3 + $0x1] sm:$0xff]
        %v960 = vld [vmem:[#allocation3 + $0x9] sm:$0xff]
        %s961 = scalar_lea.vmem [#allocation10], 128
        %v962 = vld [vmem:[%s961] sm:$0xff]
        %v963 = vld [vmem:[%s961 + $0x8] sm:$0xff]
        %v964 = vld [vmem:[%s961 + $0x10] sm:$0xff]
        %v965 = vld [vmem:[%s961 + $0x18] sm:$0xff]
        %v966 = vld [vmem:[%s961 + $0x20] sm:$0xff]
        %v967 = vld [vmem:[%s961 + $0x28] sm:$0xff]
        %v968 = vld [vmem:[%s961 + $0x30] sm:$0xff]
        %v969 = vld [vmem:[%s961 + $0x38] sm:$0xff]
        %v970 = vld [vmem:[%s961 + $0x40] sm:$0xff]
        %v971 = vld [vmem:[%s961 + $0x48] sm:$0xff]
        %v972 = vld [vmem:[%s961 + $0x50] sm:$0xff]
        %v973 = vld [vmem:[%s961 + $0x58] sm:$0xff]
        %v974 = vld [vmem:[%s961 + $0x60] sm:$0xff]
        %v975 = vld [vmem:[%s961 + $0x68] sm:$0xff]
        %v976 = vld [vmem:[%s961 + $0x70] sm:$0xff]
        %v977 = vld [vmem:[%s961 + $0x78] sm:$0xff]
        %978 = vmatprep.subr.mxu0 0.0
        %979 = vmatpush1.msra.mxu0 %v977
        %980 = vmatprep.subr.mxu0 0.0
        %981 = vmatpush1.msra.mxu0 %v976
        %982 = vmatprep.subr.mxu0 0.0
        %983 = vmatpush1.msra.mxu0 %v975
        %984 = vmatprep.subr.mxu0 0.0
        %985 = vmatpush1.msra.mxu0 %v974
        %986 = vmatprep.subr.mxu0 0.0
        %987 = vmatpush1.msra.mxu0 %v973
        %988 = vmatprep.subr.mxu0 0.0
        %989 = vmatpush1.msra.mxu0 %v972
        %990 = vmatprep.subr.mxu0 0.0
        %991 = vmatpush1.msra.mxu0 %v971
        %992 = vmatprep.subr.mxu0 0.0
        %993 = vmatpush1.msra.mxu0 %v970
        %994 = vmatprep.subr.mxu0 0.0
        %995 = vmatpush1.msra.mxu0 %v969
        %996 = vmatprep.subr.mxu0 0.0
        %997 = vmatpush1.msra.mxu0 %v968
        %998 = vmatprep.subr.mxu0 0.0
        %999 = vmatpush1.msra.mxu0 %v967
        %1000 = vmatprep.subr.mxu0 0.0
        %1001 = vmatpush1.msra.mxu0 %v966
        %1002 = vmatprep.subr.mxu0 0.0
        %1003 = vmatpush1.msra.mxu0 %v965
        %1004 = vmatprep.subr.mxu0 0.0
        %1005 = vmatpush1.msra.mxu0 %v964
        %1006 = vmatprep.subr.mxu0 0.0
        %1007 = vmatpush1.msra.mxu0 %v963
        %1008 = vmatprep.subr.mxu0 0.0
        %1009 = vmatpush1.msra.mxu0 %v962
        %1010 = vmatprep.subr.mxu0 0.0
        %1011 = vmatpush2.msra.mxu0 0.0
        %1012 = vmatprep.subr.mxu0 0.0
        %1013 = vmatpush2.msra.mxu0 0.0
        %1014 = vmatprep.subr.mxu0 0.0
        %1015 = vmatpush2.msra.mxu0 0.0
        %1016 = vmatprep.subr.mxu0 0.0
        %1017 = vmatpush2.msra.mxu0 0.0
        %1018 = vmatprep.subr.mxu0 0.0
        %1019 = vmatpush2.msra.mxu0 0.0
        %1020 = vmatprep.subr.mxu0 0.0
        %1021 = vmatpush2.msra.mxu0 0.0
        %1022 = vmatprep.subr.mxu0 0.0
        %1023 = vmatpush2.msra.mxu0 0.0
        %1024 = vmatprep.subr.mxu0 0.0
        %1025 = vmatpush2.msra.mxu0 0.0
        %1026 = vmatprep.subr.mxu0 0.0
        %1027 = vmatpush2.msra.mxu0 0.0
        %1028 = vmatprep.subr.mxu0 0.0
        %1029 = vmatpush2.msra.mxu0 0.0
        %1030 = vmatprep.subr.mxu0 0.0
        %1031 = vmatpush2.msra.mxu0 0.0
        %1032 = vmatprep.subr.mxu0 0.0
        %1033 = vmatpush2.msra.mxu0 0.0
        %1034 = vmatprep.subr.mxu0 0.0
        %1035 = vmatpush2.msra.mxu0 0.0
        %1036 = vmatprep.subr.mxu0 0.0
        %1037 = vmatpush2.msra.mxu0 0.0
        %1038 = vmatprep.subr.mxu0 0.0
        %1039 = vmatpush2.msra.mxu0 0.0
        %1040 = vmatprep.subr.mxu0 0.0
        %1041 = vmatpush2.msra.mxu0 0.0
        %1042 = vmatprep.mubr.f32.mxu0 0.0
        %1043 = vmatmul.mubr.f32.gmra.mxu0 %v959
        %v1044 = vpop.f32.mrf.mxu0
        %v1045 = vadd.f32 0.0, %v1044
        %v1046 = vpop.f32.mrf.mxu0
        %1047 = vmatprep.mubr.f32.mxu0 0.0
        %1048 = vmatmul.mubr.f32.gmra.mxu0 %v960
        %v1049 = vpop.f32.mrf.mxu0
        %v1050 = vadd.f32 0.0, %v1049
        %v1051 = vpop.f32.mrf.mxu0
        %1052 = vdwg.mxu0
        %1053 = vmatprep.subr.mxu0 0.0
        %1054 = vmatpush1.msra.mxu0 %v958
        %1055 = vmatprep.subr.mxu0 0.0
        %1056 = vmatpush1.msra.mxu0 %v957
        %1057 = vmatprep.subr.mxu0 0.0
        %1058 = vmatpush1.msra.mxu0 %v956
        %1059 = vmatprep.subr.mxu0 0.0
        %1060 = vmatpush1.msra.mxu0 %v955
        %1061 = vmatprep.subr.mxu0 0.0
        %1062 = vmatpush1.msra.mxu0 %v954
        %1063 = vmatprep.subr.mxu0 0.0
        %1064 = vmatpush1.msra.mxu0 %v953
        %1065 = vmatprep.subr.mxu0 0.0
        %1066 = vmatpush1.msra.mxu0 %v952
        %1067 = vmatprep.subr.mxu0 0.0
        %1068 = vmatpush1.msra.mxu0 %v951
        %1069 = vmatprep.subr.mxu0 0.0
        %1070 = vmatpush1.msra.mxu0 %v950
        %1071 = vmatprep.subr.mxu0 0.0
        %1072 = vmatpush1.msra.mxu0 %v949
        %1073 = vmatprep.subr.mxu0 0.0
        %1074 = vmatpush1.msra.mxu0 %v948
        %1075 = vmatprep.subr.mxu0 0.0
        %1076 = vmatpush1.msra.mxu0 %v947
        %1077 = vmatprep.subr.mxu0 0.0
        %1078 = vmatpush1.msra.mxu0 %v946
        %1079 = vmatprep.subr.mxu0 0.0
        %1080 = vmatpush1.msra.mxu0 %v945
        %1081 = vmatprep.subr.mxu0 0.0
        %1082 = vmatpush1.msra.mxu0 %v944
        %1083 = vmatprep.subr.mxu0 0.0
        %1084 = vmatpush1.msra.mxu0 %v943
        %1085 = vmatprep.subr.mxu0 0.0
        %1086 = vmatpush2.msra.mxu0 0.0
        %1087 = vmatprep.subr.mxu0 0.0
        %1088 = vmatpush2.msra.mxu0 0.0
        %1089 = vmatprep.subr.mxu0 0.0
        %1090 = vmatpush2.msra.mxu0 0.0
        %1091 = vmatprep.subr.mxu0 0.0
        %1092 = vmatpush2.msra.mxu0 0.0
        %1093 = vmatprep.subr.mxu0 0.0
        %1094 = vmatpush2.msra.mxu0 0.0
        %1095 = vmatprep.subr.mxu0 0.0
        %1096 = vmatpush2.msra.mxu0 0.0
        %1097 = vmatprep.subr.mxu0 0.0
        %1098 = vmatpush2.msra.mxu0 0.0
        %1099 = vmatprep.subr.mxu0 0.0
        %1100 = vmatpush2.msra.mxu0 0.0
        %1101 = vmatprep.subr.mxu0 0.0
        %1102 = vmatpush2.msra.mxu0 0.0
        %1103 = vmatprep.subr.mxu0 0.0
        %1104 = vmatpush2.msra.mxu0 0.0
        %1105 = vmatprep.subr.mxu0 0.0
        %1106 = vmatpush2.msra.mxu0 0.0
        %1107 = vmatprep.subr.mxu0 0.0
        %1108 = vmatpush2.msra.mxu0 0.0
        %1109 = vmatprep.subr.mxu0 0.0
        %1110 = vmatpush2.msra.mxu0 0.0
        %1111 = vmatprep.subr.mxu0 0.0
        %1112 = vmatpush2.msra.mxu0 0.0
        %1113 = vmatprep.subr.mxu0 0.0
        %1114 = vmatpush2.msra.mxu0 0.0
        %1115 = vmatprep.subr.mxu0 0.0
        %1116 = vmatpush2.msra.mxu0 0.0
        %1117 = vmatprep.mubr.f32.mxu0 0.0
        %1118 = vmatmul.mubr.f32.gmra.mxu0 %v941
        %v1119 = vpop.f32.mrf.mxu0
        %v1120 = vadd.f32 %v1045, %v1119
        %v1121 = vpop.f32.mrf.mxu0
        %1122 = vmatprep.mubr.f32.mxu0 0.0
        %1123 = vmatmul.mubr.f32.gmra.mxu0 %v942
        %v1124 = vpop.f32.mrf.mxu0
        %v1125 = vadd.f32 %v1050, %v1124
        %v1126 = vpop.f32.mrf.mxu0
        %1127 = vdwg.mxu0
        %v1128 = vld [vmem:[#allocation3 + $0x2] sm:$0xff]
        %v1129 = vld [vmem:[#allocation3 + $0xa] sm:$0xff]
        %s1130 = scalar_lea.vmem [#allocation10], 256
        %v1131 = vld [vmem:[%s1130] sm:$0xff]
        %v1132 = vld [vmem:[%s1130 + $0x8] sm:$0xff]
        %v1133 = vld [vmem:[%s1130 + $0x10] sm:$0xff]
        %v1134 = vld [vmem:[%s1130 + $0x18] sm:$0xff]
        %v1135 = vld [vmem:[%s1130 + $0x20] sm:$0xff]
        %v1136 = vld [vmem:[%s1130 + $0x28] sm:$0xff]
        %v1137 = vld [vmem:[%s1130 + $0x30] sm:$0xff]
        %v1138 = vld [vmem:[%s1130 + $0x38] sm:$0xff]
        %v1139 = vld [vmem:[%s1130 + $0x40] sm:$0xff]
        %v1140 = vld [vmem:[%s1130 + $0x48] sm:$0xff]
        %v1141 = vld [vmem:[%s1130 + $0x50] sm:$0xff]
        %v1142 = vld [vmem:[%s1130 + $0x58] sm:$0xff]
        %v1143 = vld [vmem:[%s1130 + $0x60] sm:$0xff]
        %v1144 = vld [vmem:[%s1130 + $0x68] sm:$0xff]
        %v1145 = vld [vmem:[%s1130 + $0x70] sm:$0xff]
        %v1146 = vld [vmem:[%s1130 + $0x78] sm:$0xff]
        %1147 = vmatprep.subr.mxu0 0.0
        %1148 = vmatpush1.msra.mxu0 %v1146
        %1149 = vmatprep.subr.mxu0 0.0
        %1150 = vmatpush1.msra.mxu0 %v1145
        %1151 = vmatprep.subr.mxu0 0.0
        %1152 = vmatpush1.msra.mxu0 %v1144
        %1153 = vmatprep.subr.mxu0 0.0
        %1154 = vmatpush1.msra.mxu0 %v1143
        %1155 = vmatprep.subr.mxu0 0.0
        %1156 = vmatpush1.msra.mxu0 %v1142
        %1157 = vmatprep.subr.mxu0 0.0
        %1158 = vmatpush1.msra.mxu0 %v1141
        %1159 = vmatprep.subr.mxu0 0.0
        %1160 = vmatpush1.msra.mxu0 %v1140
        %1161 = vmatprep.subr.mxu0 0.0
        %1162 = vmatpush1.msra.mxu0 %v1139
        %1163 = vmatprep.subr.mxu0 0.0
        %1164 = vmatpush1.msra.mxu0 %v1138
        %1165 = vmatprep.subr.mxu0 0.0
        %1166 = vmatpush1.msra.mxu0 %v1137
        %1167 = vmatprep.subr.mxu0 0.0
        %1168 = vmatpush1.msra.mxu0 %v1136
        %1169 = vmatprep.subr.mxu0 0.0
        %1170 = vmatpush1.msra.mxu0 %v1135
        %1171 = vmatprep.subr.mxu0 0.0
        %1172 = vmatpush1.msra.mxu0 %v1134
        %1173 = vmatprep.subr.mxu0 0.0
        %1174 = vmatpush1.msra.mxu0 %v1133
        %1175 = vmatprep.subr.mxu0 0.0
        %1176 = vmatpush1.msra.mxu0 %v1132
        %1177 = vmatprep.subr.mxu0 0.0
        %1178 = vmatpush1.msra.mxu0 %v1131
        %1179 = vmatprep.subr.mxu0 0.0
        %1180 = vmatpush2.msra.mxu0 0.0
        %1181 = vmatprep.subr.mxu0 0.0
        %1182 = vmatpush2.msra.mxu0 0.0
        %1183 = vmatprep.subr.mxu0 0.0
        %1184 = vmatpush2.msra.mxu0 0.0
        %1185 = vmatprep.subr.mxu0 0.0
        %1186 = vmatpush2.msra.mxu0 0.0
        %1187 = vmatprep.subr.mxu0 0.0
        %1188 = vmatpush2.msra.mxu0 0.0
        %1189 = vmatprep.subr.mxu0 0.0
        %1190 = vmatpush2.msra.mxu0 0.0
        %1191 = vmatprep.subr.mxu0 0.0
        %1192 = vmatpush2.msra.mxu0 0.0
        %1193 = vmatprep.subr.mxu0 0.0
        %1194 = vmatpush2.msra.mxu0 0.0
        %1195 = vmatprep.subr.mxu0 0.0
        %1196 = vmatpush2.msra.mxu0 0.0
        %1197 = vmatprep.subr.mxu0 0.0
        %1198 = vmatpush2.msra.mxu0 0.0
        %1199 = vmatprep.subr.mxu0 0.0
        %1200 = vmatpush2.msra.mxu0 0.0
        %1201 = vmatprep.subr.mxu0 0.0
        %1202 = vmatpush2.msra.mxu0 0.0
        %1203 = vmatprep.subr.mxu0 0.0
        %1204 = vmatpush2.msra.mxu0 0.0
        %1205 = vmatprep.subr.mxu0 0.0
        %1206 = vmatpush2.msra.mxu0 0.0
        %1207 = vmatprep.subr.mxu0 0.0
        %1208 = vmatpush2.msra.mxu0 0.0
        %1209 = vmatprep.subr.mxu0 0.0
        %1210 = vmatpush2.msra.mxu0 0.0
        %1211 = vmatprep.mubr.f32.mxu0 0.0
        %1212 = vmatmul.mubr.f32.gmra.mxu0 %v1128
        %v1213 = vpop.f32.mrf.mxu0
        %v1214 = vadd.f32 0.0, %v1213
        %v1215 = vpop.f32.mrf.mxu0
        %1216 = vmatprep.mubr.f32.mxu0 0.0
        %1217 = vmatmul.mubr.f32.gmra.mxu0 %v1129
        %v1218 = vpop.f32.mrf.mxu0
        %v1219 = vadd.f32 0.0, %v1218
        %v1220 = vpop.f32.mrf.mxu0
        %1221 = vdwg.mxu0
        %v1222 = vadd.f32 %v1120, %v1214
        %v1223 = vadd.f32 %v1125, %v1219
        %v1224 = vld [vmem:[%s6] sm:$0x1]
        %v1226 = vlaneseq
        %v1227 = vshrl.u32 %v1226, 7
        %v1228 = vsub.s32 0, %v1227
        %v1229 = vrot.slane %v1224, %v1228
        %v1231 = vadd.f32 %v1222, %v1229
        %v1232 = vadd.f32 %v1223, %v1229
        %v1233 = vmax.f32 %v1231, 0.0
        %v1234 = vmax.f32 %v1232, 0.0
        %v1235 = vmin.f32 %v1233, 6.0
        %v1236 = vmin.f32 %v1234, 6.0
        %v1237 = vadd.f32 %v1235, %v639
        %v1238 = vadd.f32 %v1236, %v640
        %1239 = vst [vmem:[%s340] sm:$0xff] %v1237
        %1240 = vst [vmem:[%s340 + $0x8] sm:$0xff] %v1238
        %s1241 = sand.u32 %s186, 1
        %s1242 = scalar_lea.sflag [#allocation6], %s1241
        %s1243 = sand.u32 %s186, 1
        %s1244 = smul.addr %s1243, 16
        %s1245 = scalar_lea.vmem [#allocation12], %s1244
        // Predicated region
        $region65: #{tpu_custom_call.1} parent=47 // pred_check
          %p1246 = pneg %p196
        $region66: #{tpu_custom_call.1} parent=47 // pred_check_branch
          %1248 = sbr.rel (%p1246) target = $region68
        $region67: #{tpu_custom_call.1} parent=47 // pred_region
          %s1250 = ssub.s32 256, 256
          %1251 = vsyncadd %s1242, %s1250
          %s1252 = smul.addr %s26, 2
          %s1253 = smul.addr %s1252, 128
          %s1254 = scalar_lea.hbm %s7, %s1253
          %s1255 = sshll.u32 %s1245, 4
          %s1256 = int_to_ptr.vmem [resolvable:$true] %s1255
          %1261 = dma.vmem_to_hbm [thread:$0]  %s1256, 256, %s1254, %s1242, 128, 128, 8
        $region68: #{tpu_custom_call.1} parent=47 // pred_fallthru
          _
      $region48: #{tpu_custom_call.1} parent=5 // pred_fallthru
        _
      %p1262 = scmp.le.s32.totalorder 2, %s21
      // Predicated region
      $region69: #{tpu_custom_call.1} parent=5 // pred_check
        %p1263 = pneg %p1262
      $region70: #{tpu_custom_call.1} parent=5 // pred_check_branch
        %1265 = sbr.rel (%p1263) target = $region72
      $region71: #{tpu_custom_call.1} parent=5 // pred_region
        %s1266 = ssub.s32 %s21, 2
        // Predicated region
        $region73: #{tpu_custom_call.1} parent=71 // pred_check
          %p1267 = pneg %p202
        $region74: #{tpu_custom_call.1} parent=71 // pred_check_branch
          %1269 = sbr.rel (%p1267) target = $region76
        $region75: #{tpu_custom_call.1} parent=71 // pred_region
          %s1270 = sand.u32 %s187, 1
          %s1271 = scalar_lea.sflag [#allocation6], %s1270
          %s1272 = sand.u32 %s187, 1
          %s1273 = smul.addr %s1272, 16
          %s1274 = scalar_lea.vmem [#allocation12], %s1273
          %1275 = dma.done %s1271, 256
        $region76: #{tpu_custom_call.1} parent=71 // pred_fallthru
          _
      $region72: #{tpu_custom_call.1} parent=5 // pred_fallthru
        _
    $region6: #{tpu_custom_call.1} parent=1 // loop_footer
      %s25 = sadd.s32 1, %s21
    $region7: #{tpu_custom_call.1} parent=1 // loop_footer_branch
      %20 = sbr.rel target = $region3
    $region8: #{tpu_custom_call.1} parent=1 // loop_exit
      _
    %1276 = vsyncpa [#allocation5], 1
    %s1277 = scalar_lea.sflag [#allocation5], 1
    %1278 = vsyncpa %s1277, 1
    %1279 = vsyncpa [#allocation8], 1
    %1280 = vsyncpa [#allocation11], 1
    %1281 = vsyncpa [#allocation6], 1
    %s1282 = scalar_lea.sflag [#allocation6], 1
    %1283 = vsyncpa %s1282, 1

</llo_original>
